<compile_context>
chip_gen: v7x
topology: tpu7x:2x2x1
jax: 0.10.0
libtpu: 0.0.40
codegen_flags: <defaults>
</compile_context>

<pallas_src>
import functools
import math

import numpy as np
import jax
import jax.numpy as jnp
from jax.experimental import pallas as pl
from jax.experimental.pallas import tpu as pltpu

# ----------------------------- config ---------------------------------------
B = 2            # batch
T = 8            # num tokens (context_length)
D = 32           # emb_dim
NUM_HEADS = 4
HEAD_DIM = D // NUM_HEADS
HIDDEN = 4 * D   # FF hidden dim
EPS = 1e-5
GELU_C = math.sqrt(2.0 / 3.14)   # module uses 2.0/3.14 (NOT 2/pi) — keep for parity
NEG_INF = -1e30                  # large finite bias; no NaN risk if a row were masked


# ----------------------------- kernel ---------------------------------------
def transformer_block_kernel(
    x_ref,                         # (1, T, D)
    ln1_s_ref, ln1_b_ref,          # (1, D) each
    wqkv_ref,                      # (D, 3D)   [q | k | v] columns
    wo_ref, bo_ref,                # (D, D), (1, D)
    ln2_s_ref, ln2_b_ref,          # (1, D) each
    w1_ref, b1_ref,                # (D, 4D), (1, 4D)
    w2_ref, b2_ref,                # (4D, D), (1, D)
    head_mask_ref,                 # (H*T, D)   1 where kv-row head == emb-column head
    block_ones_ref,                # (H*T, H*T) 1 where same head block
    causal_bias_ref,               # (T, H*T)   0 on allowed, NEG_INF above diagonal
    o_ref,                         # (1, T, D)
    *, num_heads, emb_dim, scale,
):
    x = x_ref[0].astype(jnp.float32)                          # (T, D)

    # ---- LayerNorm 1 (unbiased=False variance) ----
    mean1 = jnp.mean(x, axis=-1, keepdims=True)
    var1 = jnp.mean((x - mean1) ** 2, axis=-1, keepdims=True)
    h = ln1_s_ref[...] * ((x - mean1) * jax.lax.rsqrt(var1 + EPS)) + ln1_b_ref[...]

    # ---- Fused QKV projection: single MXU matmul ----
    qkv = jnp.dot(h, wqkv_ref[...], preferred_element_type=jnp.float32)   # (T, 3D)
    q = qkv[:, :emb_dim]
    k = qkv[:, emb_dim:2 * emb_dim]
    v = qkv[:, 2 * emb_dim:]

    # ---- lane-dense multi-head attention (no per-head split/stack) ----
    hm = head_mask_ref[...]                                    # (H*T, D)
    kb = jnp.concatenate([k] * num_heads, axis=0) * hm         # (H*T, D)
    vb = jnp.concatenate([v] * num_heads, axis=0) * hm         # (H*T, D)

    # scores[q, h*T + k] = <Q[q, head h], K[k, head h]>  — one NT matmul
    s = jnp.einsum('qd,td->qt', q, kb,
                   preferred_element_type=jnp.float32)         # (T, H*T)
    s = s * scale + causal_bias_ref[...]

    # Common per-row max across heads is valid for stabilization (score spread
    # here is far below exp underflow range); masked entries underflow to 0.
    m = jnp.max(s, axis=-1, keepdims=True)
    p = jnp.exp(s - m)
    # Per-head row sums, broadcast back to (T, H*T) with one constant matmul.
    denom = jnp.dot(p, block_ones_ref[...], preferred_element_type=jnp.float32)
    attn = p / denom                                           # exact divide
    # TODO(synk): attention dropout / shortcut dropout are identity (eval mode).

    # Context falls out already in head-concatenated (T, D) layout.
    ctx = jnp.dot(attn, vb, preferred_element_type=jnp.float32)           # (T, D)
    attn_out = jnp.dot(ctx, wo_ref[...],
                       preferred_element_type=jnp.float32) + bo_ref[...]  # (T, D)

    x = x + attn_out                                           # residual 1

    # ---- LayerNorm 2 ----
    mean2 = jnp.mean(x, axis=-1, keepdims=True)
    var2 = jnp.mean((x - mean2) ** 2, axis=-1, keepdims=True)
    h2 = ln2_s_ref[...] * ((x - mean2) * jax.lax.rsqrt(var2 + EPS)) + ln2_b_ref[...]

    # ---- FeedForward: Linear -> GELU(tanh approx, sqrt(2/3.14)) -> Linear ----
    f = jnp.dot(h2, w1_ref[...], preferred_element_type=jnp.float32) + b1_ref[...]
    f = 0.5 * f * (1.0 + jnp.tanh(GELU_C * (f + 0.044715 * f * f * f)))
    f = jnp.dot(f, w2_ref[...], preferred_element_type=jnp.float32) + b2_ref[...]

    o_ref[0] = (x + f).astype(o_ref.dtype)                     # residual 2


# ----------------------------- wrapper ---------------------------------------
@jax.jit
def transformer_block(x, params):
    (ln1_s, ln1_b, wq, wk, wv, wo, bo, ln2_s, ln2_b, w1, b1, w2, b2) = params
    b, t, d = x.shape
    nh, hd = NUM_HEADS, HEAD_DIM
    hidden = w1.shape[1]

    # Fuse W_q | W_k | W_v into one (D, 3D) weight (single MXU matmul in-kernel).
    wqkv = jnp.concatenate([wq, wk, wv], axis=1)

    # Compile-time constant masks (hoisted out of the kernel).
    row_head = np.arange(nh * t) // t            # head owning kv-row / score-column
    col_head = np.arange(d) // hd                # head owning an embedding column
    head_mask = jnp.asarray(row_head[:, None] == col_head[None, :], jnp.float32)
    block_ones = jnp.asarray(row_head[:, None] == row_head[None, :], jnp.float32)
    key_pos = np.arange(nh * t) % t
    causal_bias = jnp.asarray(
        np.where(key_pos[None, :] <= np.arange(t)[:, None], 0.0, NEG_INF),
        jnp.float32)

    kernel = functools.partial(
        transformer_block_kernel,
        num_heads=nh, emb_dim=d, scale=1.0 / math.sqrt(hd))

    def const_spec(shape):
        return pl.BlockSpec(shape, lambda i: (0,) * len(shape))

    # One (T, D) slab per batch element; batch is a "parallel" grid axis so the
    # batch elements shard across both TensorCores on dual-TC parts (v7x).
    # TODO(synk): for realistic sequence lengths this needs a q-row grid with a
    # flash-style online softmax instead of a fully VMEM-resident score matrix.
    out = pl.pallas_call(
        kernel,
        out_shape=jax.ShapeDtypeStruct((b, t, d), x.dtype),
        grid=(b,),
        in_specs=[
            pl.BlockSpec((1, t, d), lambda i: (i, 0, 0)),    # x (per-batch slab)
            const_spec((1, d)), const_spec((1, d)),          # ln1 scale/shift
            const_spec((d, 3 * d)),                          # wqkv
            const_spec((d, d)), const_spec((1, d)),          # wo, bo
            const_spec((1, d)), const_spec((1, d)),          # ln2 scale/shift
            const_spec((d, hidden)), const_spec((1, hidden)),  # w1, b1
            const_spec((hidden, d)), const_spec((1, d)),     # w2, b2
            const_spec((nh * t, d)),                         # head_mask
            const_spec((nh * t, nh * t)),                    # block_ones
            const_spec((t, nh * t)),                         # causal_bias
        ],
        out_specs=pl.BlockSpec((1, t, d), lambda i: (i, 0, 0)),
        compiler_params=pltpu.CompilerParams(
            dimension_semantics=("parallel",)),
    )(x, ln1_s, ln1_b, wqkv, wo, bo, ln2_s, ln2_b, w1, b1, w2, b2,
      head_mask, block_ones, causal_bias)
    return out


# ------------------------- pure-JAX reference --------------------------------
def reference_block(x, params):
    (ln1_s, ln1_b, wq, wk, wv, wo, bo, ln2_s, ln2_b, w1, b1, w2, b2) = params
    b, t, d = x.shape

    def ln(z, s, sh):
        m = jnp.mean(z, axis=-1, keepdims=True)
        v = jnp.mean((z - m) ** 2, axis=-1, keepdims=True)
        return s[0] * ((z - m) / jnp.sqrt(v + EPS)) + sh[0]

    h = ln(x, ln1_s, ln1_b)
    q = (h @ wq).reshape(b, t, NUM_HEADS, HEAD_DIM).transpose(0, 2, 1, 3)
    k = (h @ wk).reshape(b, t, NUM_HEADS, HEAD_DIM).transpose(0, 2, 1, 3)
    v = (h @ wv).reshape(b, t, NUM_HEADS, HEAD_DIM).transpose(0, 2, 1, 3)
    s = jnp.einsum('bhtd,bhsd->bhts', q, k)
    mask = jnp.triu(jnp.ones((t, t), bool), k=1)
    s = jnp.where(mask, -jnp.inf, s)
    w = jax.nn.softmax(s / math.sqrt(HEAD_DIM), axis=-1)
    ctx = jnp.einsum('bhts,bhsd->bhtd', w, v).transpose(0, 2, 1, 3).reshape(b, t, d)
    x = x + (ctx @ wo + bo[0])

    h2 = ln(x, ln2_s, ln2_b)
    f = h2 @ w1 + b1[0]
    f = 0.5 * f * (1.0 + jnp.tanh(GELU_C * (f + 0.044715 * f ** 3)))
    f = f @ w2 + b2[0]
    return x + f


# ----------------------------- main -------------------------------------------
if __name__ == "__main__":
    key = jax.random.PRNGKey(0)
    keys = jax.random.split(key, 10)

    x = jax.random.normal(keys[0], (B, T, D), dtype=jnp.float32)

    def init_w(k, shape, fan_in):
        return (jax.random.normal(k, shape, dtype=jnp.float32)
                / jnp.sqrt(jnp.float32(fan_in)))

    params = (
        jnp.ones((1, D), jnp.float32),            # ln1 scale
        jnp.zeros((1, D), jnp.float32),           # ln1 shift
        init_w(keys[1], (D, D), D),               # Wq  (in, out)
        init_w(keys[2], (D, D), D),               # Wk
        init_w(keys[3], (D, D), D),               # Wv
        init_w(keys[4], (D, D), D),               # Wo
        0.01 * jax.random.normal(keys[5], (1, D), jnp.float32),       # bo
        jnp.ones((1, D), jnp.float32),            # ln2 scale
        jnp.zeros((1, D), jnp.float32),           # ln2 shift
        init_w(keys[6], (D, HIDDEN), D),          # W1
        0.01 * jax.random.normal(keys[7], (1, HIDDEN), jnp.float32),  # b1
        init_w(keys[8], (HIDDEN, D), HIDDEN),     # W2
        0.01 * jax.random.normal(keys[9], (1, D), jnp.float32),       # b2
    )

    out = jax.block_until_ready(transformer_block(x, params))
    ref = reference_block(x, params)

    assert out.shape == (B, T, D)
    max_err = float(jnp.max(jnp.abs(out - ref)))
    # The approx-reciprocal softmax that caused the previous >2e-3 mismatch is
    # gone (exact divide). Remaining differences come only from the TPU default
    # (bf16-pass) f32 matmul precision applied with different fusions/orderings
    # in the fused kernel vs. the unfused reference.
    assert jnp.allclose(out, ref, rtol=5e-3, atol=5e-3), max_err

    print("KERNEL_OK")
</pallas_src>

<mosaic_0001>
module attributes {stable_mosaic.version = 11 : i64} {
  func.func @transformer_block_kernel(%arg0: i32, %arg1: memref<1x8x32xf32, #tpu.memory_space<vmem>>, %arg2: memref<1x32xf32, #tpu.memory_space<vmem>>, %arg3: memref<1x32xf32, #tpu.memory_space<vmem>>, %arg4: memref<32x96xf32, #tpu.memory_space<vmem>>, %arg5: memref<32x32xf32, #tpu.memory_space<vmem>>, %arg6: memref<1x32xf32, #tpu.memory_space<vmem>>, %arg7: memref<1x32xf32, #tpu.memory_space<vmem>>, %arg8: memref<1x32xf32, #tpu.memory_space<vmem>>, %arg9: memref<32x128xf32, #tpu.memory_space<vmem>>, %arg10: memref<1x128xf32, #tpu.memory_space<vmem>>, %arg11: memref<128x32xf32, #tpu.memory_space<vmem>>, %arg12: memref<1x32xf32, #tpu.memory_space<vmem>>, %arg13: memref<32x32xf32, #tpu.memory_space<vmem>>, %arg14: memref<32x32xf32, #tpu.memory_space<vmem>>, %arg15: memref<8x32xf32, #tpu.memory_space<vmem>>, %arg16: memref<1x8x32xf32, #tpu.memory_space<vmem>>) attributes {dimension_semantics = [#tpu.dimension_semantics<parallel>], iteration_bounds = array<i64: 2>, scalar_prefetch = 0 : i64, scratch_operands = 0 : i64, tpu.core_type = #tpu.core_type<tc>, window_params = [{transform_indices = @transform_0, window_bounds = array<i64: 1, 8, 32>}, {pipeline_mode = #tpu.pipeline_mode<synchronous>, transform_indices = @transform_1, window_bounds = array<i64: 1, 32>}, {pipeline_mode = #tpu.pipeline_mode<synchronous>, transform_indices = @transform_2, window_bounds = array<i64: 1, 32>}, {pipeline_mode = #tpu.pipeline_mode<synchronous>, transform_indices = @transform_3, window_bounds = array<i64: 32, 96>}, {pipeline_mode = #tpu.pipeline_mode<synchronous>, transform_indices = @transform_4, window_bounds = array<i64: 32, 32>}, {pipeline_mode = #tpu.pipeline_mode<synchronous>, transform_indices = @transform_5, window_bounds = array<i64: 1, 32>}, {pipeline_mode = #tpu.pipeline_mode<synchronous>, transform_indices = @transform_6, window_bounds = array<i64: 1, 32>}, {pipeline_mode = #tpu.pipeline_mode<synchronous>, transform_indices = @transform_7, window_bounds = array<i64: 1, 32>}, {pipeline_mode = #tpu.pipeline_mode<synchronous>, transform_indices = @transform_8, window_bounds = array<i64: 32, 128>}, {pipeline_mode = #tpu.pipeline_mode<synchronous>, transform_indices = @transform_9, window_bounds = array<i64: 1, 128>}, {pipeline_mode = #tpu.pipeline_mode<synchronous>, transform_indices = @transform_10, window_bounds = array<i64: 128, 32>}, {pipeline_mode = #tpu.pipeline_mode<synchronous>, transform_indices = @transform_11, window_bounds = array<i64: 1, 32>}, {pipeline_mode = #tpu.pipeline_mode<synchronous>, transform_indices = @transform_12, window_bounds = array<i64: 32, 32>}, {pipeline_mode = #tpu.pipeline_mode<synchronous>, transform_indices = @transform_13, window_bounds = array<i64: 32, 32>}, {pipeline_mode = #tpu.pipeline_mode<synchronous>, transform_indices = @transform_14, window_bounds = array<i64: 8, 32>}, {transform_indices = @transform_15, window_bounds = array<i64: 1, 8, 32>}]} {
    %c0 = arith.constant 0 : index
    %c0_0 = arith.constant 0 : index
    %c0_1 = arith.constant 0 : index
    %0 = vector.load %arg1[%c0, %c0_0, %c0_1] : memref<1x8x32xf32, #tpu.memory_space<vmem>>, vector<1x8x32xf32>
    %1 = vector.shape_cast %0 : vector<1x8x32xf32> to vector<8x32xf32>
    %cst = arith.constant dense<0.000000e+00> : vector<8xf32>
    %2 = vector.multi_reduction <add>, %1, %cst [1] : vector<8x32xf32> to vector<8xf32>
    %3 = vector.shape_cast %2 : vector<8xf32> to vector<8x1xf32>
    %cst_2 = arith.constant 3.200000e+01 : f32
    %4 = vector.broadcast %cst_2 : f32 to vector<8x1xf32>
    %5 = arith.divf %3, %4 : vector<8x1xf32>
    %6 = vector.broadcast %5 : vector<8x1xf32> to vector<8x32xf32>
    %7 = arith.subf %1, %6 : vector<8x32xf32>
    %8 = arith.mulf %7, %7 : vector<8x32xf32>
    %cst_3 = arith.constant dense<0.000000e+00> : vector<8xf32>
    %9 = vector.multi_reduction <add>, %8, %cst_3 [1] : vector<8x32xf32> to vector<8xf32>
    %10 = vector.shape_cast %9 : vector<8xf32> to vector<8x1xf32>
    %cst_4 = arith.constant 3.200000e+01 : f32
    %11 = vector.broadcast %cst_4 : f32 to vector<8x1xf32>
    %12 = arith.divf %10, %11 : vector<8x1xf32>
    %c0_5 = arith.constant 0 : index
    %c0_6 = arith.constant 0 : index
    %13 = vector.load %arg2[%c0_5, %c0_6] : memref<1x32xf32, #tpu.memory_space<vmem>>, vector<1x32xf32>
    %14 = vector.broadcast %5 : vector<8x1xf32> to vector<8x32xf32>
    %15 = arith.subf %1, %14 : vector<8x32xf32>
    %cst_7 = arith.constant 9.99999974E-6 : f32
    %16 = vector.broadcast %cst_7 : f32 to vector<8x1xf32>
    %17 = arith.addf %12, %16 : vector<8x1xf32>
    %18 = math.rsqrt %17 : vector<8x1xf32>
    %19 = vector.broadcast %18 : vector<8x1xf32> to vector<8x32xf32>
    %20 = arith.mulf %15, %19 : vector<8x32xf32>
    %21 = vector.broadcast %13 : vector<1x32xf32> to vector<8x32xf32>
    %22 = arith.mulf %21, %20 : vector<8x32xf32>
    %c0_8 = arith.constant 0 : index
    %c0_9 = arith.constant 0 : index
    %23 = vector.load %arg3[%c0_8, %c0_9] : memref<1x32xf32, #tpu.memory_space<vmem>>, vector<1x32xf32>
    %24 = vector.broadcast %23 : vector<1x32xf32> to vector<8x32xf32>
    %25 = arith.addf %22, %24 : vector<8x32xf32>
    %c0_10 = arith.constant 0 : index
    %c0_11 = arith.constant 0 : index
    %26 = vector.load %arg4[%c0_10, %c0_11] : memref<32x96xf32, #tpu.memory_space<vmem>>, vector<32x96xf32>
    %cst_12 = arith.constant dense<0.000000e+00> : vector<8x96xf32>
    %27 = tpu.matmul %25, %26, %cst_12 {dimension_numbers = #tpu.dot_dimension_numbers<[1], [0], [0], [1], [0, 0, 1, 1], [], []>} : vector<8x32xf32>, vector<32x96xf32>, vector<8x96xf32> -> vector<8x96xf32>
    %28 = vector.extract_strided_slice %27 {offsets = [0, 0], sizes = [8, 32], strides = [1, 1]} : vector<8x96xf32> to vector<8x32xf32>
    %29 = vector.extract_strided_slice %27 {offsets = [0, 32], sizes = [8, 32], strides = [1, 1]} : vector<8x96xf32> to vector<8x32xf32>
    %30 = vector.extract_strided_slice %27 {offsets = [0, 64], sizes = [8, 32], strides = [1, 1]} : vector<8x96xf32> to vector<8x32xf32>
    %c0_13 = arith.constant 0 : index
    %c0_14 = arith.constant 0 : index
    %31 = vector.load %arg13[%c0_13, %c0_14] : memref<32x32xf32, #tpu.memory_space<vmem>>, vector<32x32xf32>
    %32 = tpu.concatenate %29, %29, %29, %29 in 0 : vector<8x32xf32>, vector<8x32xf32>, vector<8x32xf32>, vector<8x32xf32> -> vector<32x32xf32>
    %33 = arith.mulf %32, %31 : vector<32x32xf32>
    %34 = tpu.concatenate %30, %30, %30, %30 in 0 : vector<8x32xf32>, vector<8x32xf32>, vector<8x32xf32>, vector<8x32xf32> -> vector<32x32xf32>
    %35 = arith.mulf %34, %31 : vector<32x32xf32>
    "tpu.trace_start"() <{level = 10 : i32, message = "qd,td->qt"}> : () -> ()
    %cst_15 = arith.constant dense<0.000000e+00> : vector<8x32xf32>
    %36 = tpu.matmul %28, %33, %cst_15 {dimension_numbers = #tpu.dot_dimension_numbers<[1], [1], [0], [0], [0, 0, 1, 0], [], []>} : vector<8x32xf32>, vector<32x32xf32>, vector<8x32xf32> -> vector<8x32xf32>
    "tpu.trace_stop"() : () -> ()
    %cst_16 = arith.constant 0.353553385 : f32
    %37 = vector.broadcast %cst_16 : f32 to vector<8x32xf32>
    %38 = arith.mulf %36, %37 : vector<8x32xf32>
    %c0_17 = arith.constant 0 : index
    %c0_18 = arith.constant 0 : index
    %39 = vector.load %arg15[%c0_17, %c0_18] : memref<8x32xf32, #tpu.memory_space<vmem>>, vector<8x32xf32>
    %40 = arith.addf %38, %39 : vector<8x32xf32>
    %cst_19 = arith.constant dense<0xFF800000> : vector<8xf32>
    %41 = vector.multi_reduction <maximumf>, %40, %cst_19 [1] : vector<8x32xf32> to vector<8xf32>
    %42 = vector.shape_cast %41 : vector<8xf32> to vector<8x1xf32>
    %43 = vector.broadcast %42 : vector<8x1xf32> to vector<8x32xf32>
    %44 = arith.subf %40, %43 : vector<8x32xf32>
    %45 = math.exp %44 : vector<8x32xf32>
    %c0_20 = arith.constant 0 : index
    %c0_21 = arith.constant 0 : index
    %46 = vector.load %arg14[%c0_20, %c0_21] : memref<32x32xf32, #tpu.memory_space<vmem>>, vector<32x32xf32>
    %cst_22 = arith.constant dense<0.000000e+00> : vector<8x32xf32>
    %47 = tpu.matmul %45, %46, %cst_22 {dimension_numbers = #tpu.dot_dimension_numbers<[1], [0], [0], [1], [0, 0, 1, 1], [], []>} : vector<8x32xf32>, vector<32x32xf32>, vector<8x32xf32> -> vector<8x32xf32>
    %48 = arith.divf %45, %47 : vector<8x32xf32>
    %cst_23 = arith.constant dense<0.000000e+00> : vector<8x32xf32>
    %49 = tpu.matmul %48, %35, %cst_23 {dimension_numbers = #tpu.dot_dimension_numbers<[1], [0], [0], [1], [0, 0, 1, 1], [], []>} : vector<8x32xf32>, vector<32x32xf32>, vector<8x32xf32> -> vector<8x32xf32>
    %c0_24 = arith.constant 0 : index
    %c0_25 = arith.constant 0 : index
    %50 = vector.load %arg5[%c0_24, %c0_25] : memref<32x32xf32, #tpu.memory_space<vmem>>, vector<32x32xf32>
    %cst_26 = arith.constant dense<0.000000e+00> : vector<8x32xf32>
    %51 = tpu.matmul %49, %50, %cst_26 {dimension_numbers = #tpu.dot_dimension_numbers<[1], [0], [0], [1], [0, 0, 1, 1], [], []>} : vector<8x32xf32>, vector<32x32xf32>, vector<8x32xf32> -> vector<8x32xf32>
    %c0_27 = arith.constant 0 : index
    %c0_28 = arith.constant 0 : index
    %52 = vector.load %arg6[%c0_27, %c0_28] : memref<1x32xf32, #tpu.memory_space<vmem>>, vector<1x32xf32>
    %53 = vector.broadcast %52 : vector<1x32xf32> to vector<8x32xf32>
    %54 = arith.addf %51, %53 : vector<8x32xf32>
    %55 = arith.addf %1, %54 : vector<8x32xf32>
    %cst_29 = arith.constant dense<0.000000e+00> : vector<8xf32>
    %56 = vector.multi_reduction <add>, %55, %cst_29 [1] : vector<8x32xf32> to vector<8xf32>
    %57 = vector.shape_cast %56 : vector<8xf32> to vector<8x1xf32>
    %cst_30 = arith.constant 3.200000e+01 : f32
    %58 = vector.broadcast %cst_30 : f32 to vector<8x1xf32>
    %59 = arith.divf %57, %58 : vector<8x1xf32>
    %60 = vector.broadcast %59 : vector<8x1xf32> to vector<8x32xf32>
    %61 = arith.subf %55, %60 : vector<8x32xf32>
    %62 = arith.mulf %61, %61 : vector<8x32xf32>
    %cst_31 = arith.constant dense<0.000000e+00> : vector<8xf32>
    %63 = vector.multi_reduction <add>, %62, %cst_31 [1] : vector<8x32xf32> to vector<8xf32>
    %64 = vector.shape_cast %63 : vector<8xf32> to vector<8x1xf32>
    %cst_32 = arith.constant 3.200000e+01 : f32
    %65 = vector.broadcast %cst_32 : f32 to vector<8x1xf32>
    %66 = arith.divf %64, %65 : vector<8x1xf32>
    %c0_33 = arith.constant 0 : index
    %c0_34 = arith.constant 0 : index
    %67 = vector.load %arg7[%c0_33, %c0_34] : memref<1x32xf32, #tpu.memory_space<vmem>>, vector<1x32xf32>
    %68 = vector.broadcast %59 : vector<8x1xf32> to vector<8x32xf32>
    %69 = arith.subf %55, %68 : vector<8x32xf32>
    %cst_35 = arith.constant 9.99999974E-6 : f32
    %70 = vector.broadcast %cst_35 : f32 to vector<8x1xf32>
    %71 = arith.addf %66, %70 : vector<8x1xf32>
    %72 = math.rsqrt %71 : vector<8x1xf32>
    %73 = vector.broadcast %72 : vector<8x1xf32> to vector<8x32xf32>
    %74 = arith.mulf %69, %73 : vector<8x32xf32>
    %75 = vector.broadcast %67 : vector<1x32xf32> to vector<8x32xf32>
    %76 = arith.mulf %75, %74 : vector<8x32xf32>
    %c0_36 = arith.constant 0 : index
    %c0_37 = arith.constant 0 : index
    %77 = vector.load %arg8[%c0_36, %c0_37] : memref<1x32xf32, #tpu.memory_space<vmem>>, vector<1x32xf32>
    %78 = vector.broadcast %77 : vector<1x32xf32> to vector<8x32xf32>
    %79 = arith.addf %76, %78 : vector<8x32xf32>
    %c0_38 = arith.constant 0 : index
    %c0_39 = arith.constant 0 : index
    %80 = vector.load %arg9[%c0_38, %c0_39] : memref<32x128xf32, #tpu.memory_space<vmem>>, vector<32x128xf32>
    %cst_40 = arith.constant dense<0.000000e+00> : vector<8x128xf32>
    %81 = tpu.matmul %79, %80, %cst_40 {dimension_numbers = #tpu.dot_dimension_numbers<[1], [0], [0], [1], [0, 0, 1, 1], [], []>} : vector<8x32xf32>, vector<32x128xf32>, vector<8x128xf32> -> vector<8x128xf32>
    %c0_41 = arith.constant 0 : index
    %c0_42 = arith.constant 0 : index
    %82 = vector.load %arg10[%c0_41, %c0_42] : memref<1x128xf32, #tpu.memory_space<vmem>>, vector<1x128xf32>
    %83 = vector.broadcast %82 : vector<1x128xf32> to vector<8x128xf32>
    %84 = arith.addf %81, %83 : vector<8x128xf32>
    %cst_43 = arith.constant 5.000000e-01 : f32
    %85 = vector.broadcast %cst_43 : f32 to vector<8x128xf32>
    %86 = arith.mulf %85, %84 : vector<8x128xf32>
    %cst_44 = arith.constant 4.471500e-02 : f32
    %87 = vector.broadcast %cst_44 : f32 to vector<8x128xf32>
    %88 = arith.mulf %87, %84 : vector<8x128xf32>
    %89 = arith.mulf %88, %84 : vector<8x128xf32>
    %90 = arith.mulf %89, %84 : vector<8x128xf32>
    %91 = arith.addf %84, %90 : vector<8x128xf32>
    %cst_45 = arith.constant 0.798086882 : f32
    %92 = vector.broadcast %cst_45 : f32 to vector<8x128xf32>
    %93 = arith.mulf %92, %91 : vector<8x128xf32>
    %94 = math.tanh %93 : vector<8x128xf32>
    %cst_46 = arith.constant 1.000000e+00 : f32
    %95 = vector.broadcast %cst_46 : f32 to vector<8x128xf32>
    %96 = arith.addf %95, %94 : vector<8x128xf32>
    %97 = arith.mulf %86, %96 : vector<8x128xf32>
    %c0_47 = arith.constant 0 : index
    %c0_48 = arith.constant 0 : index
    %98 = vector.load %arg11[%c0_47, %c0_48] : memref<128x32xf32, #tpu.memory_space<vmem>>, vector<128x32xf32>
    %cst_49 = arith.constant dense<0.000000e+00> : vector<8x32xf32>
    %99 = tpu.matmul %97, %98, %cst_49 {dimension_numbers = #tpu.dot_dimension_numbers<[1], [0], [0], [1], [0, 0, 1, 1], [], []>} : vector<8x128xf32>, vector<128x32xf32>, vector<8x32xf32> -> vector<8x32xf32>
    %c0_50 = arith.constant 0 : index
    %c0_51 = arith.constant 0 : index
    %100 = vector.load %arg12[%c0_50, %c0_51] : memref<1x32xf32, #tpu.memory_space<vmem>>, vector<1x32xf32>
    %101 = vector.broadcast %100 : vector<1x32xf32> to vector<8x32xf32>
    %102 = arith.addf %99, %101 : vector<8x32xf32>
    %103 = arith.addf %55, %102 : vector<8x32xf32>
    %c0_52 = arith.constant 0 : index
    %c0_53 = arith.constant 0 : index
    %c0_54 = arith.constant 0 : index
    %104 = vector.load %arg16[%c0_52, %c0_53, %c0_54] : memref<1x8x32xf32, #tpu.memory_space<vmem>>, vector<1x8x32xf32>
    %105 = vector.shape_cast %104 : vector<1x8x32xf32> to vector<8x32xf32>
    %106 = vector.shape_cast %103 : vector<8x32xf32> to vector<1x8x32xf32>
    tpu.vector_store %arg16[%c0_52, %c0_53, %c0_54], %106 {strides = array<i32>} : memref<1x8x32xf32, #tpu.memory_space<vmem>>, vector<1x8x32xf32>,
    return
  }
  func.func @transform_0(%arg0: i32) -> (i32, i32, i32) {
    %c0_i32 = arith.constant 0 : i32
    %c0_i32_0 = arith.constant 0 : i32
    %c0_i32_1 = arith.constant 0 : i32
    return %arg0, %c0_i32, %c0_i32_0 : i32, i32, i32
  }
  func.func @transform_1(%arg0: i32) -> (i32, i32) {
    %c0_i32 = arith.constant 0 : i32
    %c0_i32_0 = arith.constant 0 : i32
    %c0_i32_1 = arith.constant 0 : i32
    return %c0_i32, %c0_i32_0 : i32, i32
  }
  func.func @transform_2(%arg0: i32) -> (i32, i32) {
    %c0_i32 = arith.constant 0 : i32
    %c0_i32_0 = arith.constant 0 : i32
    %c0_i32_1 = arith.constant 0 : i32
    return %c0_i32, %c0_i32_0 : i32, i32
  }
  func.func @transform_3(%arg0: i32) -> (i32, i32) {
    %c0_i32 = arith.constant 0 : i32
    %c0_i32_0 = arith.constant 0 : i32
    %c0_i32_1 = arith.constant 0 : i32
    return %c0_i32, %c0_i32_0 : i32, i32
  }
  func.func @transform_4(%arg0: i32) -> (i32, i32) {
    %c0_i32 = arith.constant 0 : i32
    %c0_i32_0 = arith.constant 0 : i32
    %c0_i32_1 = arith.constant 0 : i32
    return %c0_i32, %c0_i32_0 : i32, i32
  }
  func.func @transform_5(%arg0: i32) -> (i32, i32) {
    %c0_i32 = arith.constant 0 : i32
    %c0_i32_0 = arith.constant 0 : i32
    %c0_i32_1 = arith.constant 0 : i32
    return %c0_i32, %c0_i32_0 : i32, i32
  }
  func.func @transform_6(%arg0: i32) -> (i32, i32) {
    %c0_i32 = arith.constant 0 : i32
    %c0_i32_0 = arith.constant 0 : i32
    %c0_i32_1 = arith.constant 0 : i32
    return %c0_i32, %c0_i32_0 : i32, i32
  }
  func.func @transform_7(%arg0: i32) -> (i32, i32) {
    %c0_i32 = arith.constant 0 : i32
    %c0_i32_0 = arith.constant 0 : i32
    %c0_i32_1 = arith.constant 0 : i32
    return %c0_i32, %c0_i32_0 : i32, i32
  }
  func.func @transform_8(%arg0: i32) -> (i32, i32) {
    %c0_i32 = arith.constant 0 : i32
    %c0_i32_0 = arith.constant 0 : i32
    %c0_i32_1 = arith.constant 0 : i32
    return %c0_i32, %c0_i32_0 : i32, i32
  }
  func.func @transform_9(%arg0: i32) -> (i32, i32) {
    %c0_i32 = arith.constant 0 : i32
    %c0_i32_0 = arith.constant 0 : i32
    %c0_i32_1 = arith.constant 0 : i32
    return %c0_i32, %c0_i32_0 : i32, i32
  }
  func.func @transform_10(%arg0: i32) -> (i32, i32) {
    %c0_i32 = arith.constant 0 : i32
    %c0_i32_0 = arith.constant 0 : i32
    %c0_i32_1 = arith.constant 0 : i32
    return %c0_i32, %c0_i32_0 : i32, i32
  }
  func.func @transform_11(%arg0: i32) -> (i32, i32) {
    %c0_i32 = arith.constant 0 : i32
    %c0_i32_0 = arith.constant 0 : i32
    %c0_i32_1 = arith.constant 0 : i32
    return %c0_i32, %c0_i32_0 : i32, i32
  }
  func.func @transform_12(%arg0: i32) -> (i32, i32) {
    %c0_i32 = arith.constant 0 : i32
    %c0_i32_0 = arith.constant 0 : i32
    %c0_i32_1 = arith.constant 0 : i32
    return %c0_i32, %c0_i32_0 : i32, i32
  }
  func.func @transform_13(%arg0: i32) -> (i32, i32) {
    %c0_i32 = arith.constant 0 : i32
    %c0_i32_0 = arith.constant 0 : i32
    %c0_i32_1 = arith.constant 0 : i32
    return %c0_i32, %c0_i32_0 : i32, i32
  }
  func.func @transform_14(%arg0: i32) -> (i32, i32) {
    %c0_i32 = arith.constant 0 : i32
    %c0_i32_0 = arith.constant 0 : i32
    %c0_i32_1 = arith.constant 0 : i32
    return %c0_i32, %c0_i32_0 : i32, i32
  }
  func.func @transform_15(%arg0: i32) -> (i32, i32, i32) {
    %c0_i32 = arith.constant 0 : i32
    %c0_i32_0 = arith.constant 0 : i32
    %c0_i32_1 = arith.constant 0 : i32
    return %arg0, %c0_i32, %c0_i32_0 : i32, i32, i32
  }
}

</mosaic_0001>

<llo_original>
// kernel: transformer_block.1
$region0: #{transformer_block.1}
  #allocation0 [shape = 'u32[]', space=smem, size = 0x4, offset = 0x4, fixed_abs, tag = 'smem constant byte address 0x4 - core index']
  #allocation1 [shape = 'u32[144,128]{1,0:T(1,128)}', space=vmem, size = 0x12000, scoped, tag = 'internal scratch']
  %s0 = inlined_call_operand.vmem [shape: f32[2,8,32], index: 0, kind: input, shape index: {}]
  %s1 = inlined_call_operand.vmem [shape: f32[1,32], index: 1, kind: input, shape index: {}]
  %s2 = inlined_call_operand.vmem [shape: f32[1,32], index: 2, kind: input, shape index: {}]
  %s3 = inlined_call_operand.vmem [shape: f32[32,96], index: 3, kind: input, shape index: {}]
  %s4 = inlined_call_operand.vmem [shape: f32[32,32], index: 4, kind: input, shape index: {}]
  %s5 = inlined_call_operand.vmem [shape: f32[1,32], index: 5, kind: input, shape index: {}]
  %s6 = inlined_call_operand.vmem [shape: f32[1,32], index: 6, kind: input, shape index: {}]
  %s7 = inlined_call_operand.vmem [shape: f32[1,32], index: 7, kind: input, shape index: {}]
  %s8 = inlined_call_operand.vmem [shape: f32[32,128], index: 8, kind: input, shape index: {}]
  %s9 = inlined_call_operand.vmem [shape: f32[1,128], index: 9, kind: input, shape index: {}]
  %s10 = inlined_call_operand.vmem [shape: f32[128,32], index: 10, kind: input, shape index: {}]
  %s11 = inlined_call_operand.vmem [shape: f32[1,32], index: 11, kind: input, shape index: {}]
  %s12 = inlined_call_operand.vmem [shape: f32[32,32], index: 12, kind: input, shape index: {}, may-alias: {12,13}]
  %s13 = inlined_call_operand.vmem [shape: f32[32,32], index: 13, kind: input, shape index: {}, may-alias: {12,13}]
  %s14 = inlined_call_operand.vmem [shape: f32[8,32], index: 14, kind: input, shape index: {}]
  %s15 = inlined_call_operand.hbm [shape: f32[2,8,32], index: 15, kind: output, shape index: {}]
  %s16 = sld [smem:[#allocation0]]
  $region93: #{transformer_block.1} parent=0
    _
  %s18 = ssub.s32 1, %s16
  %s19 = scalar_select 0, %s18, %s16
  $region1: #{transformer_block.1} parent=0
    #allocation2 [shape = 'u8[8192]{0}', space=vmem, size = 0x2000, scoped, tag = 'output window, operand 0']
    #allocation3 [shape = 's32[2]{0}', space=sflag, size = 0x8, scoped, tag = 'scoped memory for transformer_block.1']
    %20 = vsyncpa [#allocation3], 0
    %s21 = scalar_lea.sflag [#allocation3], 1
    %22 = vsyncpa %s21, 0
    loop: start=0, step=1, limit=4
    $region2: #{transformer_block.1} parent=1 // loop_pre_header
      _
    $region3: #{transformer_block.1} parent=1 // loop_header
      %s24 = sphi 0, %s28
      %p25 = scmp.ge.s32.totalorder %s24, 4
      %s34 = sphi 0, %s36
      %s37 = sphi 0, %s34
      %s38 = sphi 0, %s37
      %s54 = sphi 0, %s38
      %s58 = sphi 0, %s58
      %s60 = sphi 0, %s58
      %s61 = sphi 0, %s60
      %s75 = sphi 0, %s61
      %s79 = sphi 0, %s79
      %s81 = sphi 0, %s79
      %s82 = sphi 0, %s81
      %s96 = sphi 0, %s82
      %s100 = sphi 0, %s100
      %s102 = sphi 0, %s100
      %s103 = sphi 0, %s102
      %s117 = sphi 0, %s103
      %s121 = sphi 0, %s121
      %s123 = sphi 0, %s121
      %s124 = sphi 0, %s123
      %s138 = sphi 0, %s124
      %s142 = sphi 0, %s142
      %s144 = sphi 0, %s142
      %s145 = sphi 0, %s144
      %s159 = sphi 0, %s145
      %s163 = sphi 0, %s163
      %s165 = sphi 0, %s163
      %s166 = sphi 0, %s165
      %s180 = sphi 0, %s166
      %s184 = sphi 0, %s184
      %s186 = sphi 0, %s184
      %s187 = sphi 0, %s186
      %s201 = sphi 0, %s187
      %s205 = sphi 0, %s205
      %s207 = sphi 0, %s205
      %s208 = sphi 0, %s207
      %s222 = sphi 0, %s208
      %s226 = sphi 0, %s226
      %s228 = sphi 0, %s226
      %s229 = sphi 0, %s228
      %s243 = sphi 0, %s229
      %s247 = sphi 0, %s247
      %s249 = sphi 0, %s247
      %s250 = sphi 0, %s249
      %s264 = sphi 0, %s250
      %s268 = sphi 0, %s268
      %s270 = sphi 0, %s268
      %s271 = sphi 0, %s270
      %s285 = sphi 0, %s271
      %s289 = sphi 0, %s289
      %s291 = sphi 0, %s289
      %s292 = sphi 0, %s291
      %s306 = sphi 0, %s292
      %s310 = sphi 0, %s310
      %s312 = sphi 0, %s310
      %s313 = sphi 0, %s312
      %s327 = sphi 0, %s313
      %s331 = sphi 0, %s331
      %s333 = sphi 0, %s331
      %s334 = sphi 0, %s333
      %s348 = sphi 0, %s334
      %s354 = sphi 0, %s356
      %s357 = sphi 0, %s354
      %s358 = sphi 0, %s357
      %s374 = sphi 0, %s358
    $region4: #{transformer_block.1} parent=1 // loop_header_branch
      %27 = sbr.rel (%p25) target = $region8
    $region5: #{transformer_block.1} parent=1 // loop_body
      %s29 = ssub.s32 %s24, 1
      %s30 = ssub.s32 %s24, 2
      %s31 = sadd.s32 %s24, 1
      %s32 = ssub.s32 %s24, %s31
      %p33 = scmp.eq.s32.totalorder %s32, 0
      %s35 = sadd.s32 %s34, 1
      %s36 = scalar_select %p33, %s34, %s35
      %p39 = pneg %p33
      %p40 = scmp.eq.s32.totalorder %s24, 1
      %p41 = por %p39, %p40
      %p42 = scmp.ne.s32.totalorder %s34, %s37
      %p43 = scmp.eq.s32.totalorder %s24, 0
      %p44 = por %p42, %p43
      %p45 = scmp.ne.s32.totalorder %s34, %s37
      %p46 = scmp.eq.s32.totalorder %s29, 1
      %p47 = por %p45, %p46
      %p48 = scmp.ne.s32.totalorder %s37, %s38
      %p49 = scmp.eq.s32.totalorder %s29, 0
      %p50 = por %p48, %p49
      %p51 = scmp.ne.s32.totalorder %s37, %s38
      %p52 = scmp.eq.s32.totalorder %s30, 1
      %p53 = por %p51, %p52
      %p55 = scmp.ne.s32.totalorder %s38, %s54
      %p56 = scmp.eq.s32.totalorder %s30, 0
      %p57 = por %p55, %p56
      %s59 = sadd.s32 %s58, 1
      %p62 = scmp.eq.s32.totalorder %s24, 1
      %p63 = scmp.ne.s32.totalorder %s58, %s60
      %p64 = scmp.eq.s32.totalorder %s24, 0
      %p65 = por %p63, %p64
      %p66 = scmp.ne.s32.totalorder %s58, %s60
      %p67 = scmp.eq.s32.totalorder %s29, 1
      %p68 = por %p66, %p67
      %p69 = scmp.ne.s32.totalorder %s60, %s61
      %p70 = scmp.eq.s32.totalorder %s29, 0
      %p71 = por %p69, %p70
      %p72 = scmp.ne.s32.totalorder %s60, %s61
      %p73 = scmp.eq.s32.totalorder %s30, 1
      %p74 = por %p72, %p73
      %p76 = scmp.ne.s32.totalorder %s61, %s75
      %p77 = scmp.eq.s32.totalorder %s30, 0
      %p78 = por %p76, %p77
      %s80 = sadd.s32 %s79, 1
      %p83 = scmp.eq.s32.totalorder %s24, 1
      %p84 = scmp.ne.s32.totalorder %s79, %s81
      %p85 = scmp.eq.s32.totalorder %s24, 0
      %p86 = por %p84, %p85
      %p87 = scmp.ne.s32.totalorder %s79, %s81
      %p88 = scmp.eq.s32.totalorder %s29, 1
      %p89 = por %p87, %p88
      %p90 = scmp.ne.s32.totalorder %s81, %s82
      %p91 = scmp.eq.s32.totalorder %s29, 0
      %p92 = por %p90, %p91
      %p93 = scmp.ne.s32.totalorder %s81, %s82
      %p94 = scmp.eq.s32.totalorder %s30, 1
      %p95 = por %p93, %p94
      %p97 = scmp.ne.s32.totalorder %s82, %s96
      %p98 = scmp.eq.s32.totalorder %s30, 0
      %p99 = por %p97, %p98
      %s101 = sadd.s32 %s100, 1
      %p104 = scmp.eq.s32.totalorder %s24, 1
      %p105 = scmp.ne.s32.totalorder %s100, %s102
      %p106 = scmp.eq.s32.totalorder %s24, 0
      %p107 = por %p105, %p106
      %p108 = scmp.ne.s32.totalorder %s100, %s102
      %p109 = scmp.eq.s32.totalorder %s29, 1
      %p110 = por %p108, %p109
      %p111 = scmp.ne.s32.totalorder %s102, %s103
      %p112 = scmp.eq.s32.totalorder %s29, 0
      %p113 = por %p111, %p112
      %p114 = scmp.ne.s32.totalorder %s102, %s103
      %p115 = scmp.eq.s32.totalorder %s30, 1
      %p116 = por %p114, %p115
      %p118 = scmp.ne.s32.totalorder %s103, %s117
      %p119 = scmp.eq.s32.totalorder %s30, 0
      %p120 = por %p118, %p119
      %s122 = sadd.s32 %s121, 1
      %p125 = scmp.eq.s32.totalorder %s24, 1
      %p126 = scmp.ne.s32.totalorder %s121, %s123
      %p127 = scmp.eq.s32.totalorder %s24, 0
      %p128 = por %p126, %p127
      %p129 = scmp.ne.s32.totalorder %s121, %s123
      %p130 = scmp.eq.s32.totalorder %s29, 1
      %p131 = por %p129, %p130
      %p132 = scmp.ne.s32.totalorder %s123, %s124
      %p133 = scmp.eq.s32.totalorder %s29, 0
      %p134 = por %p132, %p133
      %p135 = scmp.ne.s32.totalorder %s123, %s124
      %p136 = scmp.eq.s32.totalorder %s30, 1
      %p137 = por %p135, %p136
      %p139 = scmp.ne.s32.totalorder %s124, %s138
      %p140 = scmp.eq.s32.totalorder %s30, 0
      %p141 = por %p139, %p140
      %s143 = sadd.s32 %s142, 1
      %p146 = scmp.eq.s32.totalorder %s24, 1
      %p147 = scmp.ne.s32.totalorder %s142, %s144
      %p148 = scmp.eq.s32.totalorder %s24, 0
      %p149 = por %p147, %p148
      %p150 = scmp.ne.s32.totalorder %s142, %s144
      %p151 = scmp.eq.s32.totalorder %s29, 1
      %p152 = por %p150, %p151
      %p153 = scmp.ne.s32.totalorder %s144, %s145
      %p154 = scmp.eq.s32.totalorder %s29, 0
      %p155 = por %p153, %p154
      %p156 = scmp.ne.s32.totalorder %s144, %s145
      %p157 = scmp.eq.s32.totalorder %s30, 1
      %p158 = por %p156, %p157
      %p160 = scmp.ne.s32.totalorder %s145, %s159
      %p161 = scmp.eq.s32.totalorder %s30, 0
      %p162 = por %p160, %p161
      %s164 = sadd.s32 %s163, 1
      %p167 = scmp.eq.s32.totalorder %s24, 1
      %p168 = scmp.ne.s32.totalorder %s163, %s165
      %p169 = scmp.eq.s32.totalorder %s24, 0
      %p170 = por %p168, %p169
      %p171 = scmp.ne.s32.totalorder %s163, %s165
      %p172 = scmp.eq.s32.totalorder %s29, 1
      %p173 = por %p171, %p172
      %p174 = scmp.ne.s32.totalorder %s165, %s166
      %p175 = scmp.eq.s32.totalorder %s29, 0
      %p176 = por %p174, %p175
      %p177 = scmp.ne.s32.totalorder %s165, %s166
      %p178 = scmp.eq.s32.totalorder %s30, 1
      %p179 = por %p177, %p178
      %p181 = scmp.ne.s32.totalorder %s166, %s180
      %p182 = scmp.eq.s32.totalorder %s30, 0
      %p183 = por %p181, %p182
      %s185 = sadd.s32 %s184, 1
      %p188 = scmp.eq.s32.totalorder %s24, 1
      %p189 = scmp.ne.s32.totalorder %s184, %s186
      %p190 = scmp.eq.s32.totalorder %s24, 0
      %p191 = por %p189, %p190
      %p192 = scmp.ne.s32.totalorder %s184, %s186
      %p193 = scmp.eq.s32.totalorder %s29, 1
      %p194 = por %p192, %p193
      %p195 = scmp.ne.s32.totalorder %s186, %s187
      %p196 = scmp.eq.s32.totalorder %s29, 0
      %p197 = por %p195, %p196
      %p198 = scmp.ne.s32.totalorder %s186, %s187
      %p199 = scmp.eq.s32.totalorder %s30, 1
      %p200 = por %p198, %p199
      %p202 = scmp.ne.s32.totalorder %s187, %s201
      %p203 = scmp.eq.s32.totalorder %s30, 0
      %p204 = por %p202, %p203
      %s206 = sadd.s32 %s205, 1
      %p209 = scmp.eq.s32.totalorder %s24, 1
      %p210 = scmp.ne.s32.totalorder %s205, %s207
      %p211 = scmp.eq.s32.totalorder %s24, 0
      %p212 = por %p210, %p211
      %p213 = scmp.ne.s32.totalorder %s205, %s207
      %p214 = scmp.eq.s32.totalorder %s29, 1
      %p215 = por %p213, %p214
      %p216 = scmp.ne.s32.totalorder %s207, %s208
      %p217 = scmp.eq.s32.totalorder %s29, 0
      %p218 = por %p216, %p217
      %p219 = scmp.ne.s32.totalorder %s207, %s208
      %p220 = scmp.eq.s32.totalorder %s30, 1
      %p221 = por %p219, %p220
      %p223 = scmp.ne.s32.totalorder %s208, %s222
      %p224 = scmp.eq.s32.totalorder %s30, 0
      %p225 = por %p223, %p224
      %s227 = sadd.s32 %s226, 1
      %p230 = scmp.eq.s32.totalorder %s24, 1
      %p231 = scmp.ne.s32.totalorder %s226, %s228
      %p232 = scmp.eq.s32.totalorder %s24, 0
      %p233 = por %p231, %p232
      %p234 = scmp.ne.s32.totalorder %s226, %s228
      %p235 = scmp.eq.s32.totalorder %s29, 1
      %p236 = por %p234, %p235
      %p237 = scmp.ne.s32.totalorder %s228, %s229
      %p238 = scmp.eq.s32.totalorder %s29, 0
      %p239 = por %p237, %p238
      %p240 = scmp.ne.s32.totalorder %s228, %s229
      %p241 = scmp.eq.s32.totalorder %s30, 1
      %p242 = por %p240, %p241
      %p244 = scmp.ne.s32.totalorder %s229, %s243
      %p245 = scmp.eq.s32.totalorder %s30, 0
      %p246 = por %p244, %p245
      %s248 = sadd.s32 %s247, 1
      %p251 = scmp.eq.s32.totalorder %s24, 1
      %p252 = scmp.ne.s32.totalorder %s247, %s249
      %p253 = scmp.eq.s32.totalorder %s24, 0
      %p254 = por %p252, %p253
      %p255 = scmp.ne.s32.totalorder %s247, %s249
      %p256 = scmp.eq.s32.totalorder %s29, 1
      %p257 = por %p255, %p256
      %p258 = scmp.ne.s32.totalorder %s249, %s250
      %p259 = scmp.eq.s32.totalorder %s29, 0
      %p260 = por %p258, %p259
      %p261 = scmp.ne.s32.totalorder %s249, %s250
      %p262 = scmp.eq.s32.totalorder %s30, 1
      %p263 = por %p261, %p262
      %p265 = scmp.ne.s32.totalorder %s250, %s264
      %p266 = scmp.eq.s32.totalorder %s30, 0
      %p267 = por %p265, %p266
      %s269 = sadd.s32 %s268, 1
      %p272 = scmp.eq.s32.totalorder %s24, 1
      %p273 = scmp.ne.s32.totalorder %s268, %s270
      %p274 = scmp.eq.s32.totalorder %s24, 0
      %p275 = por %p273, %p274
      %p276 = scmp.ne.s32.totalorder %s268, %s270
      %p277 = scmp.eq.s32.totalorder %s29, 1
      %p278 = por %p276, %p277
      %p279 = scmp.ne.s32.totalorder %s270, %s271
      %p280 = scmp.eq.s32.totalorder %s29, 0
      %p281 = por %p279, %p280
      %p282 = scmp.ne.s32.totalorder %s270, %s271
      %p283 = scmp.eq.s32.totalorder %s30, 1
      %p284 = por %p282, %p283
      %p286 = scmp.ne.s32.totalorder %s271, %s285
      %p287 = scmp.eq.s32.totalorder %s30, 0
      %p288 = por %p286, %p287
      %s290 = sadd.s32 %s289, 1
      %p293 = scmp.eq.s32.totalorder %s24, 1
      %p294 = scmp.ne.s32.totalorder %s289, %s291
      %p295 = scmp.eq.s32.totalorder %s24, 0
      %p296 = por %p294, %p295
      %p297 = scmp.ne.s32.totalorder %s289, %s291
      %p298 = scmp.eq.s32.totalorder %s29, 1
      %p299 = por %p297, %p298
      %p300 = scmp.ne.s32.totalorder %s291, %s292
      %p301 = scmp.eq.s32.totalorder %s29, 0
      %p302 = por %p300, %p301
      %p303 = scmp.ne.s32.totalorder %s291, %s292
      %p304 = scmp.eq.s32.totalorder %s30, 1
      %p305 = por %p303, %p304
      %p307 = scmp.ne.s32.totalorder %s292, %s306
      %p308 = scmp.eq.s32.totalorder %s30, 0
      %p309 = por %p307, %p308
      %s311 = sadd.s32 %s310, 1
      %p314 = scmp.eq.s32.totalorder %s24, 1
      %p315 = scmp.ne.s32.totalorder %s310, %s312
      %p316 = scmp.eq.s32.totalorder %s24, 0
      %p317 = por %p315, %p316
      %p318 = scmp.ne.s32.totalorder %s310, %s312
      %p319 = scmp.eq.s32.totalorder %s29, 1
      %p320 = por %p318, %p319
      %p321 = scmp.ne.s32.totalorder %s312, %s313
      %p322 = scmp.eq.s32.totalorder %s29, 0
      %p323 = por %p321, %p322
      %p324 = scmp.ne.s32.totalorder %s312, %s313
      %p325 = scmp.eq.s32.totalorder %s30, 1
      %p326 = por %p324, %p325
      %p328 = scmp.ne.s32.totalorder %s313, %s327
      %p329 = scmp.eq.s32.totalorder %s30, 0
      %p330 = por %p328, %p329
      %s332 = sadd.s32 %s331, 1
      %p335 = scmp.eq.s32.totalorder %s24, 1
      %p336 = scmp.ne.s32.totalorder %s331, %s333
      %p337 = scmp.eq.s32.totalorder %s24, 0
      %p338 = por %p336, %p337
      %p339 = scmp.ne.s32.totalorder %s331, %s333
      %p340 = scmp.eq.s32.totalorder %s29, 1
      %p341 = por %p339, %p340
      %p342 = scmp.ne.s32.totalorder %s333, %s334
      %p343 = scmp.eq.s32.totalorder %s29, 0
      %p344 = por %p342, %p343
      %p345 = scmp.ne.s32.totalorder %s333, %s334
      %p346 = scmp.eq.s32.totalorder %s30, 1
      %p347 = por %p345, %p346
      %p349 = scmp.ne.s32.totalorder %s334, %s348
      %p350 = scmp.eq.s32.totalorder %s30, 0
      %p351 = por %p349, %p350
      %s352 = ssub.s32 %s24, %s31
      %p353 = scmp.eq.s32.totalorder %s352, 0
      %s355 = sadd.s32 %s354, 1
      %s356 = scalar_select %p353, %s354, %s355
      %p359 = pneg %p353
      %p360 = scmp.eq.s32.totalorder %s24, 1
      %p361 = por %p359, %p360
      %p362 = scmp.ne.s32.totalorder %s354, %s357
      %p363 = scmp.eq.s32.totalorder %s24, 0
      %p364 = por %p362, %p363
      %p365 = scmp.ne.s32.totalorder %s354, %s357
      %p366 = scmp.eq.s32.totalorder %s29, 1
      %p367 = por %p365, %p366
      %p368 = scmp.ne.s32.totalorder %s357, %s358
      %p369 = scmp.eq.s32.totalorder %s29, 0
      %p370 = por %p368, %p369
      %p371 = scmp.ne.s32.totalorder %s357, %s358
      %p372 = scmp.eq.s32.totalorder %s30, 1
      %p373 = por %p371, %p372
      %p375 = scmp.ne.s32.totalorder %s358, %s374
      %p376 = scmp.eq.s32.totalorder %s30, 0
      %p377 = por %p375, %p376
      %p378 = scmp.le.s32.totalorder 1, %s24
      %p379 = scmp.lt.s32.totalorder %s24, 3
      %p380 = pnand %p378, %p379
      %p381 = pneg %p380
      // Predicated region
      $region9: #{transformer_block.1} parent=5 // pred_check
        _
      $region10: #{transformer_block.1} parent=5 // pred_check_branch
        %383 = sbr.rel (%p380) target = $region12
      $region11: #{transformer_block.1} parent=5 // pred_region
        %s384 = ssub.s32 %s24, 1
        // Predicated region
        $region13: #{transformer_block.1} parent=11 // pred_check
          %p385 = pneg %p71
        $region14: #{transformer_block.1} parent=11 // pred_check_branch
          %387 = sbr.rel (%p385) target = $region16
        $region15: #{transformer_block.1} parent=11 // pred_region
          _
        $region16: #{transformer_block.1} parent=11 // pred_fallthru
          _
        // Predicated region
        $region17: #{transformer_block.1} parent=11 // pred_check
          %p388 = pneg %p92
        $region18: #{transformer_block.1} parent=11 // pred_check_branch
          %390 = sbr.rel (%p388) target = $region20
        $region19: #{transformer_block.1} parent=11 // pred_region
          _
        $region20: #{transformer_block.1} parent=11 // pred_fallthru
          _
        // Predicated region
        $region21: #{transformer_block.1} parent=11 // pred_check
          %p391 = pneg %p113
        $region22: #{transformer_block.1} parent=11 // pred_check_branch
          %393 = sbr.rel (%p391) target = $region24
        $region23: #{transformer_block.1} parent=11 // pred_region
          _
        $region24: #{transformer_block.1} parent=11 // pred_fallthru
          _
        // Predicated region
        $region25: #{transformer_block.1} parent=11 // pred_check
          %p394 = pneg %p134
        $region26: #{transformer_block.1} parent=11 // pred_check_branch
          %396 = sbr.rel (%p394) target = $region28
        $region27: #{transformer_block.1} parent=11 // pred_region
          _
        $region28: #{transformer_block.1} parent=11 // pred_fallthru
          _
        // Predicated region
        $region29: #{transformer_block.1} parent=11 // pred_check
          %p397 = pneg %p155
        $region30: #{transformer_block.1} parent=11 // pred_check_branch
          %399 = sbr.rel (%p397) target = $region32
        $region31: #{transformer_block.1} parent=11 // pred_region
          _
        $region32: #{transformer_block.1} parent=11 // pred_fallthru
          _
        // Predicated region
        $region33: #{transformer_block.1} parent=11 // pred_check
          %p400 = pneg %p176
        $region34: #{transformer_block.1} parent=11 // pred_check_branch
          %402 = sbr.rel (%p400) target = $region36
        $region35: #{transformer_block.1} parent=11 // pred_region
          _
        $region36: #{transformer_block.1} parent=11 // pred_fallthru
          _
        // Predicated region
        $region37: #{transformer_block.1} parent=11 // pred_check
          %p403 = pneg %p197
        $region38: #{transformer_block.1} parent=11 // pred_check_branch
          %405 = sbr.rel (%p403) target = $region40
        $region39: #{transformer_block.1} parent=11 // pred_region
          _
        $region40: #{transformer_block.1} parent=11 // pred_fallthru
          _
        // Predicated region
        $region41: #{transformer_block.1} parent=11 // pred_check
          %p406 = pneg %p218
        $region42: #{transformer_block.1} parent=11 // pred_check_branch
          %408 = sbr.rel (%p406) target = $region44
        $region43: #{transformer_block.1} parent=11 // pred_region
          _
        $region44: #{transformer_block.1} parent=11 // pred_fallthru
          _
        // Predicated region
        $region45: #{transformer_block.1} parent=11 // pred_check
          %p409 = pneg %p239
        $region46: #{transformer_block.1} parent=11 // pred_check_branch
          %411 = sbr.rel (%p409) target = $region48
        $region47: #{transformer_block.1} parent=11 // pred_region
          _
        $region48: #{transformer_block.1} parent=11 // pred_fallthru
          _
        // Predicated region
        $region49: #{transformer_block.1} parent=11 // pred_check
          %p412 = pneg %p260
        $region50: #{transformer_block.1} parent=11 // pred_check_branch
          %414 = sbr.rel (%p412) target = $region52
        $region51: #{transformer_block.1} parent=11 // pred_region
          _
        $region52: #{transformer_block.1} parent=11 // pred_fallthru
          _
        // Predicated region
        $region53: #{transformer_block.1} parent=11 // pred_check
          %p415 = pneg %p281
        $region54: #{transformer_block.1} parent=11 // pred_check_branch
          %417 = sbr.rel (%p415) target = $region56
        $region55: #{transformer_block.1} parent=11 // pred_region
          _
        $region56: #{transformer_block.1} parent=11 // pred_fallthru
          _
        // Predicated region
        $region57: #{transformer_block.1} parent=11 // pred_check
          %p418 = pneg %p302
        $region58: #{transformer_block.1} parent=11 // pred_check_branch
          %420 = sbr.rel (%p418) target = $region60
        $region59: #{transformer_block.1} parent=11 // pred_region
          _
        $region60: #{transformer_block.1} parent=11 // pred_fallthru
          _
        // Predicated region
        $region61: #{transformer_block.1} parent=11 // pred_check
          %p421 = pneg %p323
        $region62: #{transformer_block.1} parent=11 // pred_check_branch
          %423 = sbr.rel (%p421) target = $region64
        $region63: #{transformer_block.1} parent=11 // pred_region
          _
        $region64: #{transformer_block.1} parent=11 // pred_fallthru
          _
        // Predicated region
        $region65: #{transformer_block.1} parent=11 // pred_check
          %p424 = pneg %p344
        $region66: #{transformer_block.1} parent=11 // pred_check_branch
          %426 = sbr.rel (%p424) target = $region68
        $region67: #{transformer_block.1} parent=11 // pred_region
          _
        $region68: #{transformer_block.1} parent=11 // pred_fallthru
          _
      $region12: #{transformer_block.1} parent=5 // pred_fallthru
        _
      %p427 = scmp.lt.s32.totalorder %s24, 2
      // Predicated region
      $region69: #{transformer_block.1} parent=5 // pred_check
        %p428 = pneg %p427
      $region70: #{transformer_block.1} parent=5 // pred_check_branch
        %430 = sbr.rel (%p428) target = $region72
      $region71: #{transformer_block.1} parent=5 // pred_region
        // Predicated region
        $region73: #{transformer_block.1} parent=71 // pred_check
          %p431 = pneg %p44
        $region74: #{transformer_block.1} parent=71 // pred_check_branch
          %433 = sbr.rel (%p431) target = $region76
        $region75: #{transformer_block.1} parent=71 // pred_region
          %p434 = scmp.lt.s32.totalorder %s24, 1
          %s435 = scalar_select %p434, %s24, 1
          %s436 = smul.addr %s435, 8
          %s437 = scalar_lea.vmem %s0, %s436
        $region76: #{transformer_block.1} parent=71 // pred_fallthru
          _
      $region72: #{transformer_block.1} parent=5 // pred_fallthru
        _
      %p438 = scmp.le.s32.totalorder 1, %s24
      %p439 = scmp.lt.s32.totalorder %s24, 3
      %p440 = pnand %p438, %p439
      %p441 = pneg %p440
      // Predicated region
      $region77: #{transformer_block.1} parent=5 // pred_check
        _
      $region78: #{transformer_block.1} parent=5 // pred_check_branch
        %443 = sbr.rel (%p440) target = $region80
      $region79: #{transformer_block.1} parent=5 // pred_region
        %s444 = ssub.s32 %s24, 1
        %p445 = scmp.lt.s32.totalorder %s29, 1
        %s446 = scalar_select %p445, %s29, 1
        %s447 = smul.addr %s446, 8
        %s448 = scalar_lea.vmem %s0, %s447
        %p449 = pneg %p50
        %p450 = pneg %p47
        %p451 = pneg %p71
        %p452 = pneg %p68
        %p453 = pneg %p92
        %p454 = pneg %p89
        %p455 = pneg %p113
        %p456 = pneg %p110
        %p457 = pneg %p134
        %p458 = pneg %p131
        %p459 = pneg %p155
        %p460 = pneg %p152
        %p461 = pneg %p176
        %p462 = pneg %p173
        %p463 = pneg %p197
        %p464 = pneg %p194
        %p465 = pneg %p218
        %p466 = pneg %p215
        %p467 = pneg %p239
        %p468 = pneg %p236
        %p469 = pneg %p260
        %p470 = pneg %p257
        %p471 = pneg %p281
        %p472 = pneg %p278
        %p473 = pneg %p302
        %p474 = pneg %p299
        %p475 = pneg %p323
        %p476 = pneg %p320
        %p477 = pneg %p344
        %p478 = pneg %p341
        %p479 = pneg %p370
        %p480 = pneg %p367
        %s481 = sand.u32 %s357, 1
        %s482 = scalar_lea.sflag [#allocation3], %s481
        %s483 = sand.u32 %s357, 1
        %s484 = smul.addr %s483, 8
        %s485 = scalar_lea.vmem [#allocation2], %s484
        %p486 = scmp.lt.s32.totalorder %s29, 1
        %s487 = scalar_select %p486, %s29, 1
        %s488 = smul.addr %s487, 8
        %s489 = scalar_lea.vmem %s0, %s488
        %v490 = vld [vmem:[%s489] sm:$0xff]
        %vm491 = vcmask 261120
        %v492 = vsel %vm491, %v490, 0.0
        %493 = vadd.xlane.f32.xlu0 %v492
        %v494 = vpop.xlane.xlu0 %493
        %v495 = vrcp.pop 32.0
        %v496 = vmul.f32 %v494, %v495
        %v497 = vsub.f32 %v490, %v496
        %v498 = vmul.f32 %v497, %v497
        %v499 = vsel %vm491, %v498, 0.0
        %500 = vadd.xlane.f32.xlu0 %v499
        %v501 = vpop.xlane.xlu0 %500
        %v502 = vmul.f32 %v501, %v495
        %v503 = vld [vmem:[%s1] sm:$0x1]
        %v504 = vadd.f32 %v502, 1e-05
        %v505 = vrsqrt.pop %v504
        %v506 = vmul.f32 %v497, %v505
        %v508 = vlaneseq
        %v509 = vshrl.u32 %v508, 7
        %v510 = vsub.s32 0, %v509
        %v511 = vrot.slane %v503, %v510
        %v513 = vmul.f32 %v511, %v506
        %v514 = vld [vmem:[%s2] sm:$0x1]
        %v516 = vlaneseq
        %v517 = vshrl.u32 %v516, 7
        %v518 = vsub.s32 0, %v517
        %v519 = vrot.slane %v514, %v518
        %v521 = vadd.f32 %v513, %v519
        %v522 = vld [vmem:[%s3] sm:$0xff]
        %v523 = vld [vmem:[%s3 + $0x8] sm:$0xff]
        %v524 = vld [vmem:[%s3 + $0x10] sm:$0xff]
        %v525 = vld [vmem:[%s3 + $0x18] sm:$0xff]
        %v527 = vsel %vm491, %v521, 0
        %529 = vmatprep.subr.mxu0 0.0
        %530 = vmatpush1.msra.mxu0 %v522
        %531 = vmatprep.subr.mxu0 0.0
        %532 = vmatpush1.msra.mxu0 %v523
        %533 = vmatprep.subr.mxu0 0.0
        %534 = vmatpush1.msra.mxu0 %v524
        %535 = vmatprep.subr.mxu0 0.0
        %536 = vmatpush1.msra.mxu0 %v525
        %537 = vmatprep.subr.mxu0 0.0
        %538 = vmatpush1.msra.mxu0 0.0
        %539 = vmatprep.subr.mxu0 0.0
        %540 = vmatpush1.msra.mxu0 0.0
        %541 = vmatprep.subr.mxu0 0.0
        %542 = vmatpush1.msra.mxu0 0.0
        %543 = vmatprep.subr.mxu0 0.0
        %544 = vmatpush1.msra.mxu0 0.0
        %545 = vmatprep.subr.mxu0 0.0
        %546 = vmatpush1.msra.mxu0 0.0
        %547 = vmatprep.subr.mxu0 0.0
        %548 = vmatpush1.msra.mxu0 0.0
        %549 = vmatprep.subr.mxu0 0.0
        %550 = vmatpush1.msra.mxu0 0.0
        %551 = vmatprep.subr.mxu0 0.0
        %552 = vmatpush1.msra.mxu0 0.0
        %553 = vmatprep.subr.mxu0 0.0
        %554 = vmatpush1.msra.mxu0 0.0
        %555 = vmatprep.subr.mxu0 0.0
        %556 = vmatpush1.msra.mxu0 0.0
        %557 = vmatprep.subr.mxu0 0.0
        %558 = vmatpush1.msra.mxu0 0.0
        %559 = vmatprep.subr.mxu0 0.0
        %560 = vmatpush1.msra.mxu0 0.0
        %561 = vmatprep.subr.mxu0 0.0
        %562 = vmatpush1.msra.mxu0 0.0
        %563 = vmatprep.subr.mxu0 0.0
        %564 = vmatpush1.msra.mxu0 0.0
        %565 = vmatprep.subr.mxu0 0.0
        %566 = vmatpush1.msra.mxu0 0.0
        %567 = vmatprep.subr.mxu0 0.0
        %568 = vmatpush1.msra.mxu0 0.0
        %569 = vmatprep.subr.mxu0 0.0
        %570 = vmatpush1.msra.mxu0 0.0
        %571 = vmatprep.subr.mxu0 0.0
        %572 = vmatpush1.msra.mxu0 0.0
        %573 = vmatprep.subr.mxu0 0.0
        %574 = vmatpush1.msra.mxu0 0.0
        %575 = vmatprep.subr.mxu0 0.0
        %576 = vmatpush1.msra.mxu0 0.0
        %577 = vmatprep.subr.mxu0 0.0
        %578 = vmatpush1.msra.mxu0 0.0
        %579 = vmatprep.subr.mxu0 0.0
        %580 = vmatpush1.msra.mxu0 0.0
        %581 = vmatprep.subr.mxu0 0.0
        %582 = vmatpush1.msra.mxu0 0.0
        %583 = vmatprep.subr.mxu0 0.0
        %584 = vmatpush1.msra.mxu0 0.0
        %585 = vmatprep.subr.mxu0 0.0
        %586 = vmatpush1.msra.mxu0 0.0
        %587 = vmatprep.subr.mxu0 0.0
        %588 = vmatpush1.msra.mxu0 0.0
        %589 = vmatprep.subr.mxu0 0.0
        %590 = vmatpush1.msra.mxu0 0.0
        %591 = vmatprep.subr.mxu0 0.0
        %592 = vmatpush1.msra.mxu0 0.0
        %593 = vmatprep.mubr.f32.mxu0 0.0
        %594 = vmatmul.mubr.f32.gmra.mrb[0].mxu0 %v527
        %v595 = vpop.f32.mrb[0].mxu0
        %v596 = vadd.f32 0.0, %v595
        %v597 = vpop.f32.mrb[0].mxu0
        %598 = vdwg.mxu0
        %v599 = vld [vmem:[%s12] sm:$0xff]
        %v600 = vld [vmem:[%s12 + $0x8] sm:$0xff]
        %v601 = vld [vmem:[%s12 + $0x10] sm:$0xff]
        %v602 = vld [vmem:[%s12 + $0x18] sm:$0xff]
        %607 = vrot.lane.b32.xlu0 %v599, 32
        %v608 = vpop.permute.xlu0 %607
        %609 = vrot.lane.b32.xlu0 %v600, 32
        %v610 = vpop.permute.xlu0 %609
        %611 = vrot.lane.b32.xlu0 %v601, 32
        %v612 = vpop.permute.xlu0 %611
        %613 = vrot.lane.b32.xlu0 %v602, 32
        %v614 = vpop.permute.xlu0 %613
        %v619 = vmul.f32 %v596, %v608
        %v620 = vmul.f32 %v596, %v610
        %v621 = vmul.f32 %v596, %v612
        %v622 = vmul.f32 %v596, %v614
        %623 = vrot.lane.b32.xlu0 %v599, 64
        %v624 = vpop.permute.xlu0 %623
        %625 = vrot.lane.b32.xlu0 %v600, 64
        %v626 = vpop.permute.xlu0 %625
        %627 = vrot.lane.b32.xlu0 %v601, 64
        %v628 = vpop.permute.xlu0 %627
        %629 = vrot.lane.b32.xlu0 %v602, 64
        %v630 = vpop.permute.xlu0 %629
        %v635 = vmul.f32 %v596, %v624
        %v636 = vmul.f32 %v596, %v626
        %v637 = vmul.f32 %v596, %v628
        %v638 = vmul.f32 %v596, %v630
        %643 = vrot.lane.b32.xlu0 %v619, 96
        %v644 = vpop.permute.xlu0 %643
        %645 = vrot.lane.b32.xlu0 %v620, 96
        %v646 = vpop.permute.xlu0 %645
        %647 = vrot.lane.b32.xlu0 %v621, 96
        %v648 = vpop.permute.xlu0 %647
        %649 = vrot.lane.b32.xlu0 %v622, 96
        %v650 = vpop.permute.xlu0 %649
        %v652 = vsel %vm491, %v596, 0
        %v654 = vsel %vm491, %v644, 0
        %v656 = vsel %vm491, %v646, 0
        %v658 = vsel %vm491, %v648, 0
        %v660 = vsel %vm491, %v650, 0
        %662 = vmatprep.subr.mxu0 0.0
        %663 = vmatpush1.xpose.msra.mxu0 %v654
        %664 = vmatprep.subr.mxu0 0.0
        %665 = vmatpush1.xpose.msra.mxu0 %v656
        %666 = vmatprep.subr.mxu0 0.0
        %667 = vmatpush1.xpose.msra.mxu0 %v658
        %668 = vmatprep.subr.mxu0 0.0
        %669 = vmatpush1.xpose.msra.mxu0 %v660
        %670 = vmatprep.subr.mxu0 0.0
        %671 = vmatpush1.xpose.msra.mxu0 0.0
        %672 = vmatprep.subr.mxu0 0.0
        %673 = vmatpush1.xpose.msra.mxu0 0.0
        %674 = vmatprep.subr.mxu0 0.0
        %675 = vmatpush1.xpose.msra.mxu0 0.0
        %676 = vmatprep.subr.mxu0 0.0
        %677 = vmatpush1.xpose.msra.mxu0 0.0
        %678 = vmatprep.subr.mxu0 0.0
        %679 = vmatpush1.xpose.msra.mxu0 0.0
        %680 = vmatprep.subr.mxu0 0.0
        %681 = vmatpush1.xpose.msra.mxu0 0.0
        %682 = vmatprep.subr.mxu0 0.0
        %683 = vmatpush1.xpose.msra.mxu0 0.0
        %684 = vmatprep.subr.mxu0 0.0
        %685 = vmatpush1.xpose.msra.mxu0 0.0
        %686 = vmatprep.subr.mxu0 0.0
        %687 = vmatpush1.xpose.msra.mxu0 0.0
        %688 = vmatprep.subr.mxu0 0.0
        %689 = vmatpush1.xpose.msra.mxu0 0.0
        %690 = vmatprep.subr.mxu0 0.0
        %691 = vmatpush1.xpose.msra.mxu0 0.0
        %692 = vmatprep.subr.mxu0 0.0
        %693 = vmatpush1.xpose.msra.mxu0 0.0
        %694 = vmatprep.subr.mxu0 0.0
        %695 = vmatpush1.xpose.msra.mxu0 0.0
        %696 = vmatprep.subr.mxu0 0.0
        %697 = vmatpush1.xpose.msra.mxu0 0.0
        %698 = vmatprep.subr.mxu0 0.0
        %699 = vmatpush1.xpose.msra.mxu0 0.0
        %700 = vmatprep.subr.mxu0 0.0
        %701 = vmatpush1.xpose.msra.mxu0 0.0
        %702 = vmatprep.subr.mxu0 0.0
        %703 = vmatpush1.xpose.msra.mxu0 0.0
        %704 = vmatprep.subr.mxu0 0.0
        %705 = vmatpush1.xpose.msra.mxu0 0.0
        %706 = vmatprep.subr.mxu0 0.0
        %707 = vmatpush1.xpose.msra.mxu0 0.0
        %708 = vmatprep.subr.mxu0 0.0
        %709 = vmatpush1.xpose.msra.mxu0 0.0
        %710 = vmatprep.subr.mxu0 0.0
        %711 = vmatpush1.xpose.msra.mxu0 0.0
        %712 = vmatprep.subr.mxu0 0.0
        %713 = vmatpush1.xpose.msra.mxu0 0.0
        %714 = vmatprep.subr.mxu0 0.0
        %715 = vmatpush1.xpose.msra.mxu0 0.0
        %716 = vmatprep.subr.mxu0 0.0
        %717 = vmatpush1.xpose.msra.mxu0 0.0
        %718 = vmatprep.subr.mxu0 0.0
        %719 = vmatpush1.xpose.msra.mxu0 0.0
        %720 = vmatprep.subr.mxu0 0.0
        %721 = vmatpush1.xpose.msra.mxu0 0.0
        %722 = vmatprep.subr.mxu0 0.0
        %723 = vmatpush1.xpose.msra.mxu0 0.0
        %724 = vmatprep.subr.mxu0 0.0
        %725 = vmatpush1.xpose.msra.mxu0 0.0
        %726 = vmatprep.mubr.f32.mxu0 0.0
        %727 = vmatmul.mubr.f32.gmra.mrb[0].mxu0 %v652
        %v728 = vpop.f32.mrb[0].mxu0
        %v729 = vadd.f32 0.0, %v728
        %v730 = vpop.f32.mrb[0].mxu0
        %731 = vdwg.mxu0
        %v732 = vmul.f32 %v729, 0.35355338
        %v733 = vld [vmem:[%s14] sm:$0xff]
        %v734 = vadd.f32 %v732, %v733
        %v735 = vsel %vm491, %v734, -inf
        %736 = vmax.xlane.f32.xlu0 %v735
        %v737 = vpop.xlane.xlu0 %736
        %v738 = vsub.f32 %v734, %v737
        %v739 = vmul.f32 %v738, 1.442695
        %v740 = vpow.pop %v739
        %v741 = vld [vmem:[%s13] sm:$0xff]
        %v742 = vld [vmem:[%s13 + $0x8] sm:$0xff]
        %v743 = vld [vmem:[%s13 + $0x10] sm:$0xff]
        %v744 = vld [vmem:[%s13 + $0x18] sm:$0xff]
        %v746 = vsel %vm491, %v740, 0
        %748 = vmatprep.subr.mxu0 0.0
        %749 = vmatpush1.msra.mxu0 %v741
        %750 = vmatprep.subr.mxu0 0.0
        %751 = vmatpush1.msra.mxu0 %v742
        %752 = vmatprep.subr.mxu0 0.0
        %753 = vmatpush1.msra.mxu0 %v743
        %754 = vmatprep.subr.mxu0 0.0
        %755 = vmatpush1.msra.mxu0 %v744
        %756 = vmatprep.subr.mxu0 0.0
        %757 = vmatpush1.msra.mxu0 0.0
        %758 = vmatprep.subr.mxu0 0.0
        %759 = vmatpush1.msra.mxu0 0.0
        %760 = vmatprep.subr.mxu0 0.0
        %761 = vmatpush1.msra.mxu0 0.0
        %762 = vmatprep.subr.mxu0 0.0
        %763 = vmatpush1.msra.mxu0 0.0
        %764 = vmatprep.subr.mxu0 0.0
        %765 = vmatpush1.msra.mxu0 0.0
        %766 = vmatprep.subr.mxu0 0.0
        %767 = vmatpush1.msra.mxu0 0.0
        %768 = vmatprep.subr.mxu0 0.0
        %769 = vmatpush1.msra.mxu0 0.0
        %770 = vmatprep.subr.mxu0 0.0
        %771 = vmatpush1.msra.mxu0 0.0
        %772 = vmatprep.subr.mxu0 0.0
        %773 = vmatpush1.msra.mxu0 0.0
        %774 = vmatprep.subr.mxu0 0.0
        %775 = vmatpush1.msra.mxu0 0.0
        %776 = vmatprep.subr.mxu0 0.0
        %777 = vmatpush1.msra.mxu0 0.0
        %778 = vmatprep.subr.mxu0 0.0
        %779 = vmatpush1.msra.mxu0 0.0
        %780 = vmatprep.subr.mxu0 0.0
        %781 = vmatpush1.msra.mxu0 0.0
        %782 = vmatprep.subr.mxu0 0.0
        %783 = vmatpush1.msra.mxu0 0.0
        %784 = vmatprep.subr.mxu0 0.0
        %785 = vmatpush1.msra.mxu0 0.0
        %786 = vmatprep.subr.mxu0 0.0
        %787 = vmatpush1.msra.mxu0 0.0
        %788 = vmatprep.subr.mxu0 0.0
        %789 = vmatpush1.msra.mxu0 0.0
        %790 = vmatprep.subr.mxu0 0.0
        %791 = vmatpush1.msra.mxu0 0.0
        %792 = vmatprep.subr.mxu0 0.0
        %793 = vmatpush1.msra.mxu0 0.0
        %794 = vmatprep.subr.mxu0 0.0
        %795 = vmatpush1.msra.mxu0 0.0
        %796 = vmatprep.subr.mxu0 0.0
        %797 = vmatpush1.msra.mxu0 0.0
        %798 = vmatprep.subr.mxu0 0.0
        %799 = vmatpush1.msra.mxu0 0.0
        %800 = vmatprep.subr.mxu0 0.0
        %801 = vmatpush1.msra.mxu0 0.0
        %802 = vmatprep.subr.mxu0 0.0
        %803 = vmatpush1.msra.mxu0 0.0
        %804 = vmatprep.subr.mxu0 0.0
        %805 = vmatpush1.msra.mxu0 0.0
        %806 = vmatprep.subr.mxu0 0.0
        %807 = vmatpush1.msra.mxu0 0.0
        %808 = vmatprep.subr.mxu0 0.0
        %809 = vmatpush1.msra.mxu0 0.0
        %810 = vmatprep.subr.mxu0 0.0
        %811 = vmatpush1.msra.mxu0 0.0
        %812 = vmatprep.mubr.f32.mxu0 0.0
        %813 = vmatmul.mubr.f32.gmra.mrb[0].mxu0 %v746
        %v814 = vpop.f32.mrb[0].mxu0
        %v815 = vadd.f32 0.0, %v814
        %v816 = vpop.f32.mrb[0].mxu0
        %817 = vdwg.mxu0
        %v818 = vrcp.pop %v815
        %v819 = vmul.f32 %v740, %v818
        %824 = vrot.lane.b32.xlu0 %v635, 64
        %v825 = vpop.permute.xlu0 %824
        %826 = vrot.lane.b32.xlu0 %v636, 64
        %v827 = vpop.permute.xlu0 %826
        %828 = vrot.lane.b32.xlu0 %v637, 64
        %v829 = vpop.permute.xlu0 %828
        %830 = vrot.lane.b32.xlu0 %v638, 64
        %v831 = vpop.permute.xlu0 %830
        %v837 = vsel %vm491, %v819, 0
        %839 = vmatprep.subr.mxu0 0.0
        %840 = vmatpush1.msra.mxu0 %v825
        %841 = vmatprep.subr.mxu0 0.0
        %842 = vmatpush1.msra.mxu0 %v827
        %843 = vmatprep.subr.mxu0 0.0
        %844 = vmatpush1.msra.mxu0 %v829
        %845 = vmatprep.subr.mxu0 0.0
        %846 = vmatpush1.msra.mxu0 %v831
        %847 = vmatprep.subr.mxu0 0.0
        %848 = vmatpush1.msra.mxu0 0.0
        %849 = vmatprep.subr.mxu0 0.0
        %850 = vmatpush1.msra.mxu0 0.0
        %851 = vmatprep.subr.mxu0 0.0
        %852 = vmatpush1.msra.mxu0 0.0
        %853 = vmatprep.subr.mxu0 0.0
        %854 = vmatpush1.msra.mxu0 0.0
        %855 = vmatprep.subr.mxu0 0.0
        %856 = vmatpush1.msra.mxu0 0.0
        %857 = vmatprep.subr.mxu0 0.0
        %858 = vmatpush1.msra.mxu0 0.0
        %859 = vmatprep.subr.mxu0 0.0
        %860 = vmatpush1.msra.mxu0 0.0
        %861 = vmatprep.subr.mxu0 0.0
        %862 = vmatpush1.msra.mxu0 0.0
        %863 = vmatprep.subr.mxu0 0.0
        %864 = vmatpush1.msra.mxu0 0.0
        %865 = vmatprep.subr.mxu0 0.0
        %866 = vmatpush1.msra.mxu0 0.0
        %867 = vmatprep.subr.mxu0 0.0
        %868 = vmatpush1.msra.mxu0 0.0
        %869 = vmatprep.subr.mxu0 0.0
        %870 = vmatpush1.msra.mxu0 0.0
        %871 = vmatprep.subr.mxu0 0.0
        %872 = vmatpush1.msra.mxu0 0.0
        %873 = vmatprep.subr.mxu0 0.0
        %874 = vmatpush1.msra.mxu0 0.0
        %875 = vmatprep.subr.mxu0 0.0
        %876 = vmatpush1.msra.mxu0 0.0
        %877 = vmatprep.subr.mxu0 0.0
        %878 = vmatpush1.msra.mxu0 0.0
        %879 = vmatprep.subr.mxu0 0.0
        %880 = vmatpush1.msra.mxu0 0.0
        %881 = vmatprep.subr.mxu0 0.0
        %882 = vmatpush1.msra.mxu0 0.0
        %883 = vmatprep.subr.mxu0 0.0
        %884 = vmatpush1.msra.mxu0 0.0
        %885 = vmatprep.subr.mxu0 0.0
        %886 = vmatpush1.msra.mxu0 0.0
        %887 = vmatprep.subr.mxu0 0.0
        %888 = vmatpush1.msra.mxu0 0.0
        %889 = vmatprep.subr.mxu0 0.0
        %890 = vmatpush1.msra.mxu0 0.0
        %891 = vmatprep.subr.mxu0 0.0
        %892 = vmatpush1.msra.mxu0 0.0
        %893 = vmatprep.subr.mxu0 0.0
        %894 = vmatpush1.msra.mxu0 0.0
        %895 = vmatprep.subr.mxu0 0.0
        %896 = vmatpush1.msra.mxu0 0.0
        %897 = vmatprep.subr.mxu0 0.0
        %898 = vmatpush1.msra.mxu0 0.0
        %899 = vmatprep.subr.mxu0 0.0
        %900 = vmatpush1.msra.mxu0 0.0
        %901 = vmatprep.subr.mxu0 0.0
        %902 = vmatpush1.msra.mxu0 0.0
        %903 = vmatprep.mubr.f32.mxu0 0.0
        %904 = vmatmul.mubr.f32.gmra.mrb[0].mxu0 %v837
        %v905 = vpop.f32.mrb[0].mxu0
        %v906 = vadd.f32 0.0, %v905
        %v907 = vpop.f32.mrb[0].mxu0
        %908 = vdwg.mxu0
        %v909 = vld [vmem:[%s4] sm:$0xff]
        %v910 = vld [vmem:[%s4 + $0x8] sm:$0xff]
        %v911 = vld [vmem:[%s4 + $0x10] sm:$0xff]
        %v912 = vld [vmem:[%s4 + $0x18] sm:$0xff]
        %v913 = vld [vmem:[%s5] sm:$0x1]
        %v915 = vlaneseq
        %v916 = vshrl.u32 %v915, 7
        %v917 = vsub.s32 0, %v916
        %v918 = vrot.slane %v913, %v917
        %v921 = vsel %vm491, %v906, 0
        %923 = vmatprep.subr.mxu0 0.0
        %924 = vmatpush1.msra.mxu0 %v909
        %925 = vmatprep.subr.mxu0 0.0
        %926 = vmatpush1.msra.mxu0 %v910
        %927 = vmatprep.subr.mxu0 0.0
        %928 = vmatpush1.msra.mxu0 %v911
        %929 = vmatprep.subr.mxu0 0.0
        %930 = vmatpush1.msra.mxu0 %v912
        %931 = vmatprep.subr.mxu0 0.0
        %932 = vmatpush1.msra.mxu0 0.0
        %933 = vmatprep.subr.mxu0 0.0
        %934 = vmatpush1.msra.mxu0 0.0
        %935 = vmatprep.subr.mxu0 0.0
        %936 = vmatpush1.msra.mxu0 0.0
        %937 = vmatprep.subr.mxu0 0.0
        %938 = vmatpush1.msra.mxu0 0.0
        %939 = vmatprep.subr.mxu0 0.0
        %940 = vmatpush1.msra.mxu0 0.0
        %941 = vmatprep.subr.mxu0 0.0
        %942 = vmatpush1.msra.mxu0 0.0
        %943 = vmatprep.subr.mxu0 0.0
        %944 = vmatpush1.msra.mxu0 0.0
        %945 = vmatprep.subr.mxu0 0.0
        %946 = vmatpush1.msra.mxu0 0.0
        %947 = vmatprep.subr.mxu0 0.0
        %948 = vmatpush1.msra.mxu0 0.0
        %949 = vmatprep.subr.mxu0 0.0
        %950 = vmatpush1.msra.mxu0 0.0
        %951 = vmatprep.subr.mxu0 0.0
        %952 = vmatpush1.msra.mxu0 0.0
        %953 = vmatprep.subr.mxu0 0.0
        %954 = vmatpush1.msra.mxu0 0.0
        %955 = vmatprep.subr.mxu0 0.0
        %956 = vmatpush1.msra.mxu0 0.0
        %957 = vmatprep.subr.mxu0 0.0
        %958 = vmatpush1.msra.mxu0 0.0
        %959 = vmatprep.subr.mxu0 0.0
        %960 = vmatpush1.msra.mxu0 0.0
        %961 = vmatprep.subr.mxu0 0.0
        %962 = vmatpush1.msra.mxu0 0.0
        %963 = vmatprep.subr.mxu0 0.0
        %964 = vmatpush1.msra.mxu0 0.0
        %965 = vmatprep.subr.mxu0 0.0
        %966 = vmatpush1.msra.mxu0 0.0
        %967 = vmatprep.subr.mxu0 0.0
        %968 = vmatpush1.msra.mxu0 0.0
        %969 = vmatprep.subr.mxu0 0.0
        %970 = vmatpush1.msra.mxu0 0.0
        %971 = vmatprep.subr.mxu0 0.0
        %972 = vmatpush1.msra.mxu0 0.0
        %973 = vmatprep.subr.mxu0 0.0
        %974 = vmatpush1.msra.mxu0 0.0
        %975 = vmatprep.subr.mxu0 0.0
        %976 = vmatpush1.msra.mxu0 0.0
        %977 = vmatprep.subr.mxu0 0.0
        %978 = vmatpush1.msra.mxu0 0.0
        %979 = vmatprep.subr.mxu0 0.0
        %980 = vmatpush1.msra.mxu0 0.0
        %981 = vmatprep.subr.mxu0 0.0
        %982 = vmatpush1.msra.mxu0 0.0
        %983 = vmatprep.subr.mxu0 0.0
        %984 = vmatpush1.msra.mxu0 0.0
        %985 = vmatprep.subr.mxu0 0.0
        %986 = vmatpush1.msra.mxu0 0.0
        %987 = vmatprep.mubr.f32.mxu0 0.0
        %988 = vmatmul.mubr.f32.gmra.mrb[0].mxu0 %v921
        %v989 = vpop.f32.mrb[0].mxu0
        %v990 = vadd.f32 %v918, %v989
        %v991 = vpop.f32.mrb[0].mxu0
        %992 = vdwg.mxu0
        %v993 = vadd.f32 %v490, %v990
        %v994 = vsel %vm491, %v993, 0.0
        %995 = vadd.xlane.f32.xlu0 %v994
        %v996 = vpop.xlane.xlu0 %995
        %v997 = vmul.f32 %v996, %v495
        %v998 = vsub.f32 %v993, %v997
        %v999 = vmul.f32 %v998, %v998
        %v1000 = vsel %vm491, %v999, 0.0
        %1001 = vadd.xlane.f32.xlu0 %v1000
        %v1002 = vpop.xlane.xlu0 %1001
        %v1003 = vmul.f32 %v1002, %v495
        %v1004 = vld [vmem:[%s6] sm:$0x1]
        %v1005 = vadd.f32 %v1003, 1e-05
        %v1006 = vrsqrt.pop %v1005
        %v1007 = vmul.f32 %v998, %v1006
        %v1009 = vlaneseq
        %v1010 = vshrl.u32 %v1009, 7
        %v1011 = vsub.s32 0, %v1010
        %v1012 = vrot.slane %v1004, %v1011
        %v1014 = vmul.f32 %v1012, %v1007
        %v1015 = vld [vmem:[%s7] sm:$0x1]
        %v1017 = vlaneseq
        %v1018 = vshrl.u32 %v1017, 7
        %v1019 = vsub.s32 0, %v1018
        %v1020 = vrot.slane %v1015, %v1019
        %v1022 = vadd.f32 %v1014, %v1020
        %v1023 = vld [vmem:[%s8] sm:$0xff]
        %v1024 = vld [vmem:[%s8 + $0x8] sm:$0xff]
        %v1025 = vld [vmem:[%s8 + $0x10] sm:$0xff]
        %v1026 = vld [vmem:[%s8 + $0x18] sm:$0xff]
        %v1027 = vld [vmem:[%s9] sm:$0x1]
        %v1029 = vlaneseq
        %v1030 = vshrl.u32 %v1029, 7
        %v1031 = vsub.s32 0, %v1030
        %v1032 = vrot.slane %v1027, %v1031
        %v1035 = vsel %vm491, %v1022, 0
        %1037 = vmatprep.subr.mxu0 0.0
        %1038 = vmatpush1.msra.mxu0 %v1023
        %1039 = vmatprep.subr.mxu0 0.0
        %1040 = vmatpush1.msra.mxu0 %v1024
        %1041 = vmatprep.subr.mxu0 0.0
        %1042 = vmatpush1.msra.mxu0 %v1025
        %1043 = vmatprep.subr.mxu0 0.0
        %1044 = vmatpush1.msra.mxu0 %v1026
        %1045 = vmatprep.subr.mxu0 0.0
        %1046 = vmatpush1.msra.mxu0 0.0
        %1047 = vmatprep.subr.mxu0 0.0
        %1048 = vmatpush1.msra.mxu0 0.0
        %1049 = vmatprep.subr.mxu0 0.0
        %1050 = vmatpush1.msra.mxu0 0.0
        %1051 = vmatprep.subr.mxu0 0.0
        %1052 = vmatpush1.msra.mxu0 0.0
        %1053 = vmatprep.subr.mxu0 0.0
        %1054 = vmatpush1.msra.mxu0 0.0
        %1055 = vmatprep.subr.mxu0 0.0
        %1056 = vmatpush1.msra.mxu0 0.0
        %1057 = vmatprep.subr.mxu0 0.0
        %1058 = vmatpush1.msra.mxu0 0.0
        %1059 = vmatprep.subr.mxu0 0.0
        %1060 = vmatpush1.msra.mxu0 0.0
        %1061 = vmatprep.subr.mxu0 0.0
        %1062 = vmatpush1.msra.mxu0 0.0
        %1063 = vmatprep.subr.mxu0 0.0
        %1064 = vmatpush1.msra.mxu0 0.0
        %1065 = vmatprep.subr.mxu0 0.0
        %1066 = vmatpush1.msra.mxu0 0.0
        %1067 = vmatprep.subr.mxu0 0.0
        %1068 = vmatpush1.msra.mxu0 0.0
        %1069 = vmatprep.subr.mxu0 0.0
        %1070 = vmatpush1.msra.mxu0 0.0
        %1071 = vmatprep.subr.mxu0 0.0
        %1072 = vmatpush1.msra.mxu0 0.0
        %1073 = vmatprep.subr.mxu0 0.0
        %1074 = vmatpush1.msra.mxu0 0.0
        %1075 = vmatprep.subr.mxu0 0.0
        %1076 = vmatpush1.msra.mxu0 0.0
        %1077 = vmatprep.subr.mxu0 0.0
        %1078 = vmatpush1.msra.mxu0 0.0
        %1079 = vmatprep.subr.mxu0 0.0
        %1080 = vmatpush1.msra.mxu0 0.0
        %1081 = vmatprep.subr.mxu0 0.0
        %1082 = vmatpush1.msra.mxu0 0.0
        %1083 = vmatprep.subr.mxu0 0.0
        %1084 = vmatpush1.msra.mxu0 0.0
        %1085 = vmatprep.subr.mxu0 0.0
        %1086 = vmatpush1.msra.mxu0 0.0
        %1087 = vmatprep.subr.mxu0 0.0
        %1088 = vmatpush1.msra.mxu0 0.0
        %1089 = vmatprep.subr.mxu0 0.0
        %1090 = vmatpush1.msra.mxu0 0.0
        %1091 = vmatprep.subr.mxu0 0.0
        %1092 = vmatpush1.msra.mxu0 0.0
        %1093 = vmatprep.subr.mxu0 0.0
        %1094 = vmatpush1.msra.mxu0 0.0
        %1095 = vmatprep.subr.mxu0 0.0
        %1096 = vmatpush1.msra.mxu0 0.0
        %1097 = vmatprep.subr.mxu0 0.0
        %1098 = vmatpush1.msra.mxu0 0.0
        %1099 = vmatprep.subr.mxu0 0.0
        %1100 = vmatpush1.msra.mxu0 0.0
        %1101 = vmatprep.mubr.f32.mxu0 0.0
        %1102 = vmatmul.mubr.f32.gmra.mrb[0].mxu0 %v1035
        %v1103 = vpop.f32.mrb[0].mxu0
        %v1104 = vadd.f32 %v1032, %v1103
        %v1105 = vpop.f32.mrb[0].mxu0
        %1106 = vdwg.mxu0
        %v1107 = vmul.f32 %v1104, 0.5
        %v1108 = vmul.f32 %v1104, 0.044715
        %v1109 = vmul.f32 %v1108, %v1104
        %v1110 = vmul.f32 %v1109, %v1104
        %v1111 = vadd.f32 %v1104, %v1110
        %v1112 = vmul.f32 %v1111, 0.7980869
        %v1113 = vtanh.pop %v1112
        %v1114 = vadd.f32 %v1113, 1.0
        %v1115 = vmul.f32 %v1107, %v1114
        %v1116 = vld [vmem:[%s10] sm:$0xff]
        %v1117 = vld [vmem:[%s10 + $0x8] sm:$0xff]
        %v1118 = vld [vmem:[%s10 + $0x10] sm:$0xff]
        %v1119 = vld [vmem:[%s10 + $0x18] sm:$0xff]
        %v1120 = vld [vmem:[%s10 + $0x20] sm:$0xff]
        %v1121 = vld [vmem:[%s10 + $0x28] sm:$0xff]
        %v1122 = vld [vmem:[%s10 + $0x30] sm:$0xff]
        %v1123 = vld [vmem:[%s10 + $0x38] sm:$0xff]
        %v1124 = vld [vmem:[%s10 + $0x40] sm:$0xff]
        %v1125 = vld [vmem:[%s10 + $0x48] sm:$0xff]
        %v1126 = vld [vmem:[%s10 + $0x50] sm:$0xff]
        %v1127 = vld [vmem:[%s10 + $0x58] sm:$0xff]
        %v1128 = vld [vmem:[%s10 + $0x60] sm:$0xff]
        %v1129 = vld [vmem:[%s10 + $0x68] sm:$0xff]
        %v1130 = vld [vmem:[%s10 + $0x70] sm:$0xff]
        %v1131 = vld [vmem:[%s10 + $0x78] sm:$0xff]
        %v1132 = vld [vmem:[%s11] sm:$0x1]
        %v1134 = vlaneseq
        %v1135 = vshrl.u32 %v1134, 7
        %v1136 = vsub.s32 0, %v1135
        %v1137 = vrot.slane %v1132, %v1136
        %1139 = vmatprep.subr.mxu0 0.0
        %1140 = vmatpush1.msra.mxu0 %v1116
        %1141 = vmatprep.subr.mxu0 0.0
        %1142 = vmatpush1.msra.mxu0 %v1117
        %1143 = vmatprep.subr.mxu0 0.0
        %1144 = vmatpush1.msra.mxu0 %v1118
        %1145 = vmatprep.subr.mxu0 0.0
        %1146 = vmatpush1.msra.mxu0 %v1119
        %1147 = vmatprep.subr.mxu0 0.0
        %1148 = vmatpush1.msra.mxu0 %v1120
        %1149 = vmatprep.subr.mxu0 0.0
        %1150 = vmatpush1.msra.mxu0 %v1121
        %1151 = vmatprep.subr.mxu0 0.0
        %1152 = vmatpush1.msra.mxu0 %v1122
        %1153 = vmatprep.subr.mxu0 0.0
        %1154 = vmatpush1.msra.mxu0 %v1123
        %1155 = vmatprep.subr.mxu0 0.0
        %1156 = vmatpush1.msra.mxu0 %v1124
        %1157 = vmatprep.subr.mxu0 0.0
        %1158 = vmatpush1.msra.mxu0 %v1125
        %1159 = vmatprep.subr.mxu0 0.0
        %1160 = vmatpush1.msra.mxu0 %v1126
        %1161 = vmatprep.subr.mxu0 0.0
        %1162 = vmatpush1.msra.mxu0 %v1127
        %1163 = vmatprep.subr.mxu0 0.0
        %1164 = vmatpush1.msra.mxu0 %v1128
        %1165 = vmatprep.subr.mxu0 0.0
        %1166 = vmatpush1.msra.mxu0 %v1129
        %1167 = vmatprep.subr.mxu0 0.0
        %1168 = vmatpush1.msra.mxu0 %v1130
        %1169 = vmatprep.subr.mxu0 0.0
        %1170 = vmatpush1.msra.mxu0 %v1131
        %1171 = vmatprep.subr.mxu0 0.0
        %1172 = vmatpush1.msra.mxu0 0.0
        %1173 = vmatprep.subr.mxu0 0.0
        %1174 = vmatpush1.msra.mxu0 0.0
        %1175 = vmatprep.subr.mxu0 0.0
        %1176 = vmatpush1.msra.mxu0 0.0
        %1177 = vmatprep.subr.mxu0 0.0
        %1178 = vmatpush1.msra.mxu0 0.0
        %1179 = vmatprep.subr.mxu0 0.0
        %1180 = vmatpush1.msra.mxu0 0.0
        %1181 = vmatprep.subr.mxu0 0.0
        %1182 = vmatpush1.msra.mxu0 0.0
        %1183 = vmatprep.subr.mxu0 0.0
        %1184 = vmatpush1.msra.mxu0 0.0
        %1185 = vmatprep.subr.mxu0 0.0
        %1186 = vmatpush1.msra.mxu0 0.0
        %1187 = vmatprep.subr.mxu0 0.0
        %1188 = vmatpush1.msra.mxu0 0.0
        %1189 = vmatprep.subr.mxu0 0.0
        %1190 = vmatpush1.msra.mxu0 0.0
        %1191 = vmatprep.subr.mxu0 0.0
        %1192 = vmatpush1.msra.mxu0 0.0
        %1193 = vmatprep.subr.mxu0 0.0
        %1194 = vmatpush1.msra.mxu0 0.0
        %1195 = vmatprep.subr.mxu0 0.0
        %1196 = vmatpush1.msra.mxu0 0.0
        %1197 = vmatprep.subr.mxu0 0.0
        %1198 = vmatpush1.msra.mxu0 0.0
        %1199 = vmatprep.subr.mxu0 0.0
        %1200 = vmatpush1.msra.mxu0 0.0
        %1201 = vmatprep.subr.mxu0 0.0
        %1202 = vmatpush1.msra.mxu0 0.0
        %1203 = vmatprep.mubr.f32.mxu0 0.0
        %1204 = vmatmul.mubr.f32.gmra.mrb[0].mxu0 %v1115
        %v1205 = vpop.f32.mrb[0].mxu0
        %v1206 = vadd.f32 %v1137, %v1205
        %v1207 = vpop.f32.mrb[0].mxu0
        %1208 = vdwg.mxu0
        %v1209 = vadd.f32 %v993, %v1206
        %1210 = vst.msk [vmem:[%s485] sm:$0xff] %vm491, %v1209
        %s1211 = sand.u32 %s357, 1
        %s1212 = scalar_lea.sflag [#allocation3], %s1211
        %s1213 = sand.u32 %s357, 1
        %s1214 = smul.addr %s1213, 8
        %s1215 = scalar_lea.vmem [#allocation2], %s1214
        // Predicated region
        $region81: #{transformer_block.1} parent=79 // pred_check
          %p1216 = pneg %p367
        $region82: #{transformer_block.1} parent=79 // pred_check_branch
          %1218 = sbr.rel (%p1216) target = $region84
        $region83: #{transformer_block.1} parent=79 // pred_region
          %s1220 = ssub.s32 128, 128
          %1221 = vsyncadd %s1212, %s1220
          %s1222 = smul.addr %s29, 128
          %s1223 = scalar_lea.hbm %s15, %s1222
          %s1225 = sshll.u32 %s1215, 4
          %s1226 = int_to_ptr.vmem [resolvable:$true] %s1225
          %1228 = dma.vmem_to_hbm [thread:$0]  %s1226, 128, %s1223, %s1212
        $region84: #{transformer_block.1} parent=79 // pred_fallthru
          _
      $region80: #{transformer_block.1} parent=5 // pred_fallthru
        _
      %p1229 = scmp.le.s32.totalorder 2, %s24
      // Predicated region
      $region85: #{transformer_block.1} parent=5 // pred_check
        %p1230 = pneg %p1229
      $region86: #{transformer_block.1} parent=5 // pred_check_branch
        %1232 = sbr.rel (%p1230) target = $region88
      $region87: #{transformer_block.1} parent=5 // pred_region
        %s1233 = ssub.s32 %s24, 2
        // Predicated region
        $region89: #{transformer_block.1} parent=87 // pred_check
          %p1234 = pneg %p373
        $region90: #{transformer_block.1} parent=87 // pred_check_branch
          %1236 = sbr.rel (%p1234) target = $region92
        $region91: #{transformer_block.1} parent=87 // pred_region
          %s1237 = sand.u32 %s358, 1
          %s1238 = scalar_lea.sflag [#allocation3], %s1237
          %s1239 = sand.u32 %s358, 1
          %s1240 = smul.addr %s1239, 8
          %s1241 = scalar_lea.vmem [#allocation2], %s1240
          %1242 = dma.done %s1238, 128
        $region92: #{transformer_block.1} parent=87 // pred_fallthru
          _
      $region88: #{transformer_block.1} parent=5 // pred_fallthru
        _
    $region6: #{transformer_block.1} parent=1 // loop_footer
      %s28 = sadd.s32 1, %s24
    $region7: #{transformer_block.1} parent=1 // loop_footer_branch
      %23 = sbr.rel target = $region3
    $region8: #{transformer_block.1} parent=1 // loop_exit
      _
    %1243 = vsyncpa [#allocation3], 1
    %s1244 = scalar_lea.sflag [#allocation3], 1
    %1245 = vsyncpa %s1244, 1

</llo_original>
